<compile_context>
chip_gen: v7x
topology: tpu7x:2x2x1
jax: 0.10.0
libtpu: 0.0.40
codegen_flags: <defaults>
</compile_context>

<pallas_src>
import jax
import jax.numpy as jnp
import numpy as np
from jax.experimental import pallas as pl
from jax.experimental.pallas import tpu as pltpu


def _link_kernel(xq_ref, gq_ref, xk_ref, gk_ref, wf_ref, gamma_ref, o_ref,
                 m_sc, acc_sc):
    # xq_ref:  (1, C, TQ)   query / residual tile (channels-first, lane = space)
    # gq_ref:  (1, 1, TQ)   raw guiding-map channel 1, query tile
    # xk_ref:  (1, C, TK)   key / value tile
    # gk_ref:  (1, 1, TK)   raw guiding-map channel 1, key tile
    # wf_ref:  (Ca + C, Ca) bf16 fused weights:
    #              rows [0, Ca)      = Wq_aug^T Wk_aug (padded)
    #              rows [Ca, Ca + C) = Wv_aug (padded)
    # gamma_ref: (1,) f32 in SMEM
    # o_ref:   (1, C, TQ)
    # m_sc:    (1, TQ)  f32  running softmax max
    # acc_sc:  (Ca, TQ) f32  rows [0, C) = un-normalized PV, row C = denominator
    ki = pl.program_id(2)
    C = xq_ref.shape[1]
    Ca = wf_ref.shape[1]
    pad = Ca - C                                    # row 0 of pad = "ones" channel
    TQ = xq_ref.shape[2]
    TK = xk_ref.shape[2]

    @pl.when(ki == 0)
    def _():
        m_sc[...] = jnp.full_like(m_sc, -jnp.inf)
        acc_sc[...] = jnp.zeros_like(acc_sc)

    # Guide-scaled, bias-augmented key-tile input: rows [0,C)=x_k*s_k, row C=s_k.
    s_k = 1.0 + jax.nn.sigmoid(gk_ref[0])                                 # (1, TK) EUP
    rowk = jax.lax.broadcasted_iota(jnp.int32, (pad, TK), 0)
    xs_k = jnp.concatenate([xk_ref[0] * s_k, jnp.where(rowk == 0, s_k, 0.0)],
                           axis=0).astype(jnp.bfloat16)                   # (Ca, TK)

    # One fused projection matmul per KV tile (MXU, bf16 in / f32 acc):
    #   rows [0, Ca)      -> (Wq_aug^T Wk_aug) @ xs_k   (projected keys)
    #   rows [Ca, Ca + C) -> Wv_aug @ xs_k              (guide-scaled values)
    big = jnp.dot(wf_ref[...], xs_k, preferred_element_type=jnp.float32)  # (Ca+C, TK)

    # Query-side augmented input (no projection: it is folded into the key side).
    s_q = 1.0 + jax.nn.sigmoid(gq_ref[0])                                 # (1, TQ)
    rowq = jax.lax.broadcasted_iota(jnp.int32, (pad, TQ), 0)
    xs_q = jnp.concatenate([xq_ref[0] * s_q, jnp.where(rowq == 0, s_q, 0.0)],
                           axis=0).astype(jnp.bfloat16)                   # (Ca, TQ)

    # Keys-major energy: e_t[j, i] = (M @ xs_k)[:, j] . xs_q[:, i] = energy[i, j].
    # Softmax stats then run over the SUBLANE axis and the PV dot is plain NN.
    e_t = jax.lax.dot_general(
        big[:Ca].astype(jnp.bfloat16), xs_q,
        (((0,), (0,)), ((), ())), preferred_element_type=jnp.float32)     # (TK, TQ)

    # Online softmax over keys (the ki grid axis).
    m_prev = m_sc[...]                                                    # (1, TQ)
    m_new = jnp.maximum(m_prev, jnp.max(e_t, axis=0, keepdims=True))
    alpha = jnp.exp(m_prev - m_new)                                       # (1, TQ)
    # Fuse the bf16 cast into the exp: only one (TK, TQ) softmax buffer stays live.
    p = jnp.exp(e_t - m_new).astype(jnp.bfloat16)                         # (TK, TQ)

    # Values + ones row: PV and the softmax denominator from one MXU pass.
    v_ext = jnp.concatenate([big[Ca:], jnp.where(rowk == 0, 1.0, 0.0)],
                            axis=0).astype(jnp.bfloat16)                  # (Ca, TK)
    pv = jnp.dot(v_ext, p, preferred_element_type=jnp.float32)            # (Ca, TQ)

    acc_sc[...] = alpha * acc_sc[...] + pv
    m_sc[...] = m_new

    @pl.when(ki == pl.num_programs(2) - 1)
    def _():
        acc = acc_sc[...]                                                 # (Ca, TQ)
        inv = pl.reciprocal(acc[C:C + 1], approx=True)                    # (1, TQ) EUP
        o_ref[0] = gamma_ref[0] * (acc[:C] * inv) + xq_ref[0]


def _pick_tile(n):
    for t in (512, 256, 128):
        if n % t == 0:
            return t
    return n          # full extent (allowed even when not a multiple of 128)


@jax.jit
def spatial_deps_local_guide(x, guiding_map0, params):
    """x: (B, C, H, W) f32; guiding_map0: (B, Cg>=2, H, W) f32.

    params = (wq, bq, wk, bk, wv, bv, gamma) in PyTorch Conv2d-1x1 layouts:
      wq, wk: (C//8, C); bq, bk: (C//8,); wv: (C, C); bv: (C,); gamma: (1,).
    """
    wq, bq, wk, bk, wv, bv, gamma = params
    B, C, H, W = x.shape
    N = H * W
    Ca = ((C + 1 + 7) // 8) * 8          # augmented channels, minimal sublane multiple
    TQ = _pick_tile(N)
    TK = _pick_tile(N)

    # Fold biases via an augmented ones-channel, fold Wq^T Wk into one
    # (C+1, C+1) energy kernel, and fuse it with the value projection so the
    # Pallas kernel does exactly one projection matmul per KV tile.
    wq_aug = jnp.concatenate([wq, bq[:, None]], axis=1)          # (Cq, C+1)
    wk_aug = jnp.concatenate([wk, bk[:, None]], axis=1)          # (Cq, C+1)
    wv_aug = jnp.concatenate([wv, bv[:, None]], axis=1)          # (C,  C+1)
    m_aug = wq_aug.T @ wk_aug                                    # (C+1, C+1)
    cpad = Ca - (C + 1)
    w_fused = jnp.concatenate(
        [jnp.pad(m_aug, ((0, cpad), (0, cpad))),                 # (Ca, Ca)
         jnp.pad(wv_aug, ((0, 0), (0, cpad)))],                  # (C,  Ca)
        axis=0).astype(jnp.bfloat16)                             # (Ca + C, Ca)

    # Layout glue is reshape-only (no transposes): NCHW -> (B, C, N).
    x_cn = x.reshape(B, C, N)
    gm = guiding_map0[:, 1:2, :, :].reshape(B, 1, N)

    # Per-step VMEM footprint (double-buffered blocks + weights + scratch +
    # live intermediates), 2x headroom, capped well below v7x's 64 MiB.
    est = (2 * 4 * (C * TQ + TQ + C * TK + TK)        # f32 input blocks, double-buffered
           + 2 * 4 * C * TQ                           # f32 output block, double-buffered
           + 2 * 2 * (Ca + C) * Ca                    # bf16 fused weights, double-buffered
           + 4 * (TQ + Ca * TQ)                       # m / acc scratch
           + 4 * TK * TQ + 2 * TK * TQ                # energy f32 + p bf16
           + 4 * (Ca + C) * TK                        # fused projection output
           + 2 * Ca * (TQ + 2 * TK))                  # xs_q / xs_k / v_ext bf16
    vmem_limit = int(min(48 * 1024 * 1024, max(16 * 1024 * 1024, 2 * est)))

    grid_spec = pltpu.PrefetchScalarGridSpec(
        num_scalar_prefetch=0,
        grid=(B, N // TQ, N // TK),
        in_specs=[
            pl.BlockSpec((1, C, TQ), lambda b, qi, ki: (b, 0, qi)),   # x, query/residual
            pl.BlockSpec((1, 1, TQ), lambda b, qi, ki: (b, 0, qi)),   # guide, query tile
            pl.BlockSpec((1, C, TK), lambda b, qi, ki: (b, 0, ki)),   # x, key/value tile
            pl.BlockSpec((1, 1, TK), lambda b, qi, ki: (b, 0, ki)),   # guide, key tile
            pl.BlockSpec((Ca + C, Ca), lambda b, qi, ki: (0, 0)),     # fused weights
            pl.BlockSpec(memory_space=pltpu.MemorySpace.SMEM),        # gamma scalar
        ],
        out_specs=pl.BlockSpec((1, C, TQ), lambda b, qi, ki: (b, 0, qi)),
        scratch_shapes=[
            pltpu.VMEM((1, TQ), jnp.float32),     # running softmax max
            pltpu.VMEM((Ca, TQ), jnp.float32),    # rows [0,C): PV acc, row C: denom
        ],
    )

    out_cn = pl.pallas_call(
        _link_kernel,
        out_shape=jax.ShapeDtypeStruct((B, C, N), jnp.float32),
        grid_spec=grid_spec,
        compiler_params=pltpu.CompilerParams(
            # Batch / query-tile axes are independent; the KV axis is the
            # online-softmax reduction.
            # TODO(synk): on v7x verify with an xprof trace that the batch axis
            # actually splits across the two TensorCores; if not, switch the
            # leading axis to pltpu.CORE_PARALLEL.
            dimension_semantics=("parallel", "parallel", "arbitrary"),
            vmem_limit_bytes=vmem_limit),
    )(x_cn, gm, x_cn, gm, w_fused, gamma)

    return out_cn.reshape(B, C, H, W)


def reference_forward(x, guiding_map0, params):
    """Plain-JAX (f32) reimplementation of the PyTorch forward (validation)."""
    wq, bq, wk, bk, wv, bv, gamma = params
    B, C, H, W = x.shape
    N = H * W
    g = jax.nn.sigmoid(guiding_map0[:, 1:2, :, :])                  # (B,1,H,W)
    s = 1.0 + g
    q = (jnp.einsum('bchw,dc->bdhw', x, wq) + bq.reshape(1, -1, 1, 1)) * s
    k = (jnp.einsum('bchw,dc->bdhw', x, wk) + bk.reshape(1, -1, 1, 1)) * s
    v = (jnp.einsum('bchw,dc->bdhw', x, wv) + bv.reshape(1, -1, 1, 1)) * s
    pq = q.reshape(B, -1, N).transpose(0, 2, 1)                     # (B,HW,Cq)
    pk = k.reshape(B, -1, N)                                        # (B,Cq,HW)
    energy = jnp.einsum('bic,bcj->bij', pq, pk)                     # (B,HW,HW)
    attn = jax.nn.softmax(energy, axis=-1)
    pv = v.reshape(B, C, N)                                         # (B,C,HW)
    out = jnp.einsum('bcj,bij->bci', pv, attn).reshape(B, C, H, W)
    return gamma[0] * out + x


if __name__ == "__main__":
    B, C, H, W = 2, 32, 16, 16     # in_dim=32 -> C//8 = 4, N = 256 (lane-dense)
    Cg = 2                         # guiding map must have a channel index 1
    Cq = C // 8

    key = jax.random.PRNGKey(0)
    kx, kg, k1, k2, k3, k4, k5, k6 = jax.random.split(key, 8)

    x = jax.random.normal(kx, (B, C, H, W), dtype=jnp.float32)
    guiding_map0 = jax.random.normal(kg, (B, Cg, H, W), dtype=jnp.float32)

    # Conv2d 1x1 parameters in PyTorch layout (out, in); deterministic init.
    wq = 0.1 * jax.random.normal(k1, (Cq, C), dtype=jnp.float32)
    bq = 0.1 * jax.random.normal(k2, (Cq,), dtype=jnp.float32)
    wk = 0.1 * jax.random.normal(k3, (Cq, C), dtype=jnp.float32)
    bk = 0.1 * jax.random.normal(k4, (Cq,), dtype=jnp.float32)
    wv = 0.1 * jax.random.normal(k5, (C, C), dtype=jnp.float32)
    bv = 0.1 * jax.random.normal(k6, (C,), dtype=jnp.float32)
    # gamma is nn.Parameter(torch.zeros(1)); set nonzero so the attention path
    # actually contributes to the checked output.
    gamma = jnp.array([0.5], dtype=jnp.float32)

    params = (wq, bq, wk, bk, wv, bv, gamma)

    out = spatial_deps_local_guide(x, guiding_map0, params)
    out = jax.block_until_ready(out)

    ref = reference_forward(x, guiding_map0, params)
    # bf16 MXU matmuls + approx reciprocal vs f32 reference -> loosened tol.
    np.testing.assert_allclose(np.asarray(out), np.asarray(ref),
                               rtol=2e-2, atol=2e-2)
    print("KERNEL_OK")
</pallas_src>

<mosaic_0001>
module attributes {stable_mosaic.version = 11 : i64} {
  func.func @_link_kernel(%arg0: i32, %arg1: i32, %arg2: i32, %arg3: memref<1x32x256xf32, #tpu.memory_space<vmem>>, %arg4: memref<1x1x256xf32, #tpu.memory_space<vmem>>, %arg5: memref<1x32x256xf32, #tpu.memory_space<vmem>>, %arg6: memref<1x1x256xf32, #tpu.memory_space<vmem>>, %arg7: memref<72x40xbf16, #tpu.memory_space<vmem>>, %arg8: memref<1xf32, #tpu.memory_space<smem>>, %arg9: memref<1x32x256xf32, #tpu.memory_space<vmem>>, %arg10: memref<1x256xf32, #tpu.memory_space<vmem>>, %arg11: memref<40x256xf32, #tpu.memory_space<vmem>>) attributes {dimension_semantics = [#tpu.dimension_semantics<parallel>, #tpu.dimension_semantics<parallel>, #tpu.dimension_semantics<arbitrary>], iteration_bounds = array<i64: 2, 1, 1>, scalar_prefetch = 0 : i64, scratch_operands = 2 : i64, tpu.core_type = #tpu.core_type<tc>, window_params = [{transform_indices = @transform_0, window_bounds = array<i64: 1, 32, 256>}, {transform_indices = @transform_1, window_bounds = array<i64: 1, 1, 256>}, {transform_indices = @transform_2, window_bounds = array<i64: 1, 32, 256>}, {transform_indices = @transform_3, window_bounds = array<i64: 1, 1, 256>}, {pipeline_mode = #tpu.pipeline_mode<synchronous>, transform_indices = @transform_4, window_bounds = array<i64: 72, 40>}, {transform_indices = @transform_5, window_bounds = array<i64: 1>}, {transform_indices = @transform_6, window_bounds = array<i64: 1, 32, 256>}]} {
    %c0_i32 = arith.constant 0 : i32
    %0 = arith.cmpi eq, %arg2, %c0_i32 : i32
    %1 = arith.extui %0 : i1 to i32
    %c0_i32_0 = arith.constant 0 : i32
    %2 = arith.cmpi ne, %1, %c0_i32_0 : i32
    scf.if %2 {
      %cst_38 = arith.constant 0xFF800000 : f32
      %80 = vector.broadcast %cst_38 : f32 to vector<1x256xf32>
      %c0_39 = arith.constant 0 : index
      %c0_40 = arith.constant 0 : index
      %81 = vector.load %arg10[%c0_39, %c0_40] : memref<1x256xf32, #tpu.memory_space<vmem>>, vector<1x256xf32>
      tpu.vector_store %arg10[%c0_39, %c0_40], %80 {strides = array<i32>} : memref<1x256xf32, #tpu.memory_space<vmem>>, vector<1x256xf32>,
      %cst_41 = arith.constant 0.000000e+00 : f32
      %82 = vector.broadcast %cst_41 : f32 to vector<40x256xf32>
      %c0_42 = arith.constant 0 : index
      %c0_43 = arith.constant 0 : index
      %83 = vector.load %arg11[%c0_42, %c0_43] : memref<40x256xf32, #tpu.memory_space<vmem>>, vector<40x256xf32>
      tpu.vector_store %arg11[%c0_42, %c0_43], %82 {strides = array<i32>} : memref<40x256xf32, #tpu.memory_space<vmem>>, vector<40x256xf32>,
    } else {
    }
    %c0 = arith.constant 0 : index
    %c0_1 = arith.constant 0 : index
    %c0_2 = arith.constant 0 : index
    %3 = vector.load %arg6[%c0, %c0_1, %c0_2] : memref<1x1x256xf32, #tpu.memory_space<vmem>>, vector<1x1x256xf32>
    %4 = vector.shape_cast %3 : vector<1x1x256xf32> to vector<1x256xf32>
    %5 = arith.negf %4 : vector<1x256xf32>
    %6 = math.exp %5 : vector<1x256xf32>
    %cst = arith.constant 1.000000e+00 : f32
    %7 = vector.broadcast %cst : f32 to vector<1x256xf32>
    %8 = arith.addf %7, %6 : vector<1x256xf32>
    %9 = arith.divf %7, %8 : vector<1x256xf32>
    %cst_3 = arith.constant 1.000000e+00 : f32
    %10 = vector.broadcast %cst_3 : f32 to vector<1x256xf32>
    %11 = arith.addf %10, %9 : vector<1x256xf32>
    %12 = tpu.iota {dimensions = array<i32: 0>} : vector<8x256xi32>
    %c0_4 = arith.constant 0 : index
    %c0_5 = arith.constant 0 : index
    %c0_6 = arith.constant 0 : index
    %13 = vector.load %arg5[%c0_4, %c0_5, %c0_6] : memref<1x32x256xf32, #tpu.memory_space<vmem>>, vector<1x32x256xf32>
    %14 = vector.shape_cast %13 : vector<1x32x256xf32> to vector<32x256xf32>
    %15 = vector.broadcast %11 : vector<1x256xf32> to vector<32x256xf32>
    %16 = arith.mulf %14, %15 : vector<32x256xf32>
    %c0_i32_7 = arith.constant 0 : i32
    %17 = vector.broadcast %c0_i32_7 : i32 to vector<8x256xi32>
    %18 = arith.cmpi eq, %12, %17 : vector<8x256xi32>
    %cst_8 = arith.constant 0.000000e+00 : f32
    %19 = vector.shape_cast %11 : vector<1x256xf32> to vector<1x256xf32>
    %20 = vector.broadcast %19 : vector<1x256xf32> to vector<8x256xf32>
    %21 = vector.broadcast %cst_8 : f32 to vector<8x256xf32>
    %22 = arith.select %18, %20, %21 : vector<8x256xi1>, vector<8x256xf32>
    %23 = tpu.concatenate %16, %22 in 0 : vector<32x256xf32>, vector<8x256xf32> -> vector<40x256xf32>
    %24 = arith.truncf %23 : vector<40x256xf32> to vector<40x256xbf16>
    %c0_9 = arith.constant 0 : index
    %c0_10 = arith.constant 0 : index
    %25 = vector.load %arg7[%c0_9, %c0_10] : memref<72x40xbf16, #tpu.memory_space<vmem>>, vector<72x40xbf16>
    %cst_11 = arith.constant dense<0.000000e+00> : vector<72x256xf32>
    %26 = tpu.matmul %25, %24, %cst_11 {dimension_numbers = #tpu.dot_dimension_numbers<[1], [0], [0], [1], [0, 0, 1, 1], [], []>} : vector<72x40xbf16>, vector<40x256xbf16>, vector<72x256xf32> -> vector<72x256xf32>
    %c0_12 = arith.constant 0 : index
    %c0_13 = arith.constant 0 : index
    %c0_14 = arith.constant 0 : index
    %27 = vector.load %arg4[%c0_12, %c0_13, %c0_14] : memref<1x1x256xf32, #tpu.memory_space<vmem>>, vector<1x1x256xf32>
    %28 = vector.shape_cast %27 : vector<1x1x256xf32> to vector<1x256xf32>
    %29 = arith.negf %28 : vector<1x256xf32>
    %30 = math.exp %29 : vector<1x256xf32>
    %cst_15 = arith.constant 1.000000e+00 : f32
    %31 = vector.broadcast %cst_15 : f32 to vector<1x256xf32>
    %32 = arith.addf %31, %30 : vector<1x256xf32>
    %33 = arith.divf %31, %32 : vector<1x256xf32>
    %cst_16 = arith.constant 1.000000e+00 : f32
    %34 = vector.broadcast %cst_16 : f32 to vector<1x256xf32>
    %35 = arith.addf %34, %33 : vector<1x256xf32>
    %36 = tpu.iota {dimensions = array<i32: 0>} : vector<8x256xi32>
    %c0_17 = arith.constant 0 : index
    %c0_18 = arith.constant 0 : index
    %c0_19 = arith.constant 0 : index
    %37 = vector.load %arg3[%c0_17, %c0_18, %c0_19] : memref<1x32x256xf32, #tpu.memory_space<vmem>>, vector<1x32x256xf32>
    %38 = vector.shape_cast %37 : vector<1x32x256xf32> to vector<32x256xf32>
    %39 = vector.broadcast %35 : vector<1x256xf32> to vector<32x256xf32>
    %40 = arith.mulf %38, %39 : vector<32x256xf32>
    %c0_i32_20 = arith.constant 0 : i32
    %41 = vector.broadcast %c0_i32_20 : i32 to vector<8x256xi32>
    %42 = arith.cmpi eq, %36, %41 : vector<8x256xi32>
    %cst_21 = arith.constant 0.000000e+00 : f32
    %43 = vector.shape_cast %35 : vector<1x256xf32> to vector<1x256xf32>
    %44 = vector.broadcast %43 : vector<1x256xf32> to vector<8x256xf32>
    %45 = vector.broadcast %cst_21 : f32 to vector<8x256xf32>
    %46 = arith.select %42, %44, %45 : vector<8x256xi1>, vector<8x256xf32>
    %47 = tpu.concatenate %40, %46 in 0 : vector<32x256xf32>, vector<8x256xf32> -> vector<40x256xf32>
    %48 = arith.truncf %47 : vector<40x256xf32> to vector<40x256xbf16>
    %49 = vector.extract_strided_slice %26 {offsets = [0, 0], sizes = [40, 256], strides = [1, 1]} : vector<72x256xf32> to vector<40x256xf32>
    %50 = arith.truncf %49 : vector<40x256xf32> to vector<40x256xbf16>
    %cst_22 = arith.constant dense<0.000000e+00> : vector<256x256xf32>
    %51 = tpu.matmul %50, %48, %cst_22 {dimension_numbers = #tpu.dot_dimension_numbers<[0], [0], [1], [1], [0, 1, 1, 1], [], []>} : vector<40x256xbf16>, vector<40x256xbf16>, vector<256x256xf32> -> vector<256x256xf32>
    %c0_23 = arith.constant 0 : index
    %c0_24 = arith.constant 0 : index
    %52 = vector.load %arg10[%c0_23, %c0_24] : memref<1x256xf32, #tpu.memory_space<vmem>>, vector<1x256xf32>
    %cst_25 = arith.constant dense<0xFF800000> : vector<256xf32>
    %53 = vector.multi_reduction <maximumf>, %51, %cst_25 [0] : vector<256x256xf32> to vector<256xf32>
    %54 = vector.shape_cast %53 : vector<256xf32> to vector<1x256xf32>
    %55 = arith.maximumf %52, %54 : vector<1x256xf32>
    %56 = arith.subf %52, %55 : vector<1x256xf32>
    %57 = math.exp %56 : vector<1x256xf32>
    %58 = vector.broadcast %55 : vector<1x256xf32> to vector<256x256xf32>
    %59 = arith.subf %51, %58 : vector<256x256xf32>
    %60 = math.exp %59 : vector<256x256xf32>
    %61 = arith.truncf %60 : vector<256x256xf32> to vector<256x256xbf16>
    %62 = vector.extract_strided_slice %26 {offsets = [40, 0], sizes = [32, 256], strides = [1, 1]} : vector<72x256xf32> to vector<32x256xf32>
    %c0_i32_26 = arith.constant 0 : i32
    %63 = vector.broadcast %c0_i32_26 : i32 to vector<8x256xi32>
    %64 = arith.cmpi eq, %12, %63 : vector<8x256xi32>
    %cst_27 = arith.constant 1.000000e+00 : f32
    %cst_28 = arith.constant 0.000000e+00 : f32
    %65 = vector.broadcast %cst_27 : f32 to vector<8x256xf32>
    %66 = vector.broadcast %cst_28 : f32 to vector<8x256xf32>
    %67 = arith.select %64, %65, %66 : vector<8x256xi1>, vector<8x256xf32>
    %68 = tpu.concatenate %62, %67 in 0 : vector<32x256xf32>, vector<8x256xf32> -> vector<40x256xf32>
    %69 = arith.truncf %68 : vector<40x256xf32> to vector<40x256xbf16>
    %cst_29 = arith.constant dense<0.000000e+00> : vector<40x256xf32>
    %70 = tpu.matmul %69, %61, %cst_29 {dimension_numbers = #tpu.dot_dimension_numbers<[1], [0], [0], [1], [0, 0, 1, 1], [], []>} : vector<40x256xbf16>, vector<256x256xbf16>, vector<40x256xf32> -> vector<40x256xf32>
    %c0_30 = arith.constant 0 : index
    %c0_31 = arith.constant 0 : index
    %71 = vector.load %arg11[%c0_30, %c0_31] : memref<40x256xf32, #tpu.memory_space<vmem>>, vector<40x256xf32>
    %72 = vector.broadcast %57 : vector<1x256xf32> to vector<40x256xf32>
    %73 = arith.mulf %72, %71 : vector<40x256xf32>
    %74 = arith.addf %73, %70 : vector<40x256xf32>
    %c0_32 = arith.constant 0 : index
    %c0_33 = arith.constant 0 : index
    %75 = vector.load %arg11[%c0_32, %c0_33] : memref<40x256xf32, #tpu.memory_space<vmem>>, vector<40x256xf32>
    tpu.vector_store %arg11[%c0_32, %c0_33], %74 {strides = array<i32>} : memref<40x256xf32, #tpu.memory_space<vmem>>, vector<40x256xf32>,
    %c0_34 = arith.constant 0 : index
    %c0_35 = arith.constant 0 : index
    %76 = vector.load %arg10[%c0_34, %c0_35] : memref<1x256xf32, #tpu.memory_space<vmem>>, vector<1x256xf32>
    tpu.vector_store %arg10[%c0_34, %c0_35], %55 {strides = array<i32>} : memref<1x256xf32, #tpu.memory_space<vmem>>, vector<1x256xf32>,
    %c0_i32_36 = arith.constant 0 : i32
    %77 = arith.cmpi eq, %arg2, %c0_i32_36 : i32
    %78 = arith.extui %77 : i1 to i32
    %c0_i32_37 = arith.constant 0 : i32
    %79 = arith.cmpi ne, %78, %c0_i32_37 : i32
    scf.if %79 {
      %c0_38 = arith.constant 0 : index
      %c0_39 = arith.constant 0 : index
      %80 = vector.load %arg11[%c0_38, %c0_39] : memref<40x256xf32, #tpu.memory_space<vmem>>, vector<40x256xf32>
      %81 = vector.extract_strided_slice %80 {offsets = [32, 0], sizes = [1, 256], strides = [1, 1]} : vector<40x256xf32> to vector<1x256xf32>
      %82 = tpu.reciprocal %81 {approx = true} : vector<1x256xf32> -> vector<1x256xf32>
      %c0_40 = arith.constant 0 : index
      %83 = memref.load %arg8[%c0_40] : memref<1xf32, #tpu.memory_space<smem>>
      %84 = vector.extract_strided_slice %80 {offsets = [0, 0], sizes = [32, 256], strides = [1, 1]} : vector<40x256xf32> to vector<32x256xf32>
      %85 = vector.broadcast %82 : vector<1x256xf32> to vector<32x256xf32>
      %86 = arith.mulf %84, %85 : vector<32x256xf32>
      %87 = vector.broadcast %83 : f32 to vector<32x256xf32>
      %88 = arith.mulf %87, %86 : vector<32x256xf32>
      %c0_41 = arith.constant 0 : index
      %c0_42 = arith.constant 0 : index
      %c0_43 = arith.constant 0 : index
      %89 = vector.load %arg3[%c0_41, %c0_42, %c0_43] : memref<1x32x256xf32, #tpu.memory_space<vmem>>, vector<1x32x256xf32>
      %90 = vector.shape_cast %89 : vector<1x32x256xf32> to vector<32x256xf32>
      %91 = arith.addf %88, %90 : vector<32x256xf32>
      %c0_44 = arith.constant 0 : index
      %c0_45 = arith.constant 0 : index
      %c0_46 = arith.constant 0 : index
      %92 = vector.load %arg9[%c0_44, %c0_45, %c0_46] : memref<1x32x256xf32, #tpu.memory_space<vmem>>, vector<1x32x256xf32>
      %93 = vector.shape_cast %92 : vector<1x32x256xf32> to vector<32x256xf32>
      %94 = vector.shape_cast %91 : vector<32x256xf32> to vector<1x32x256xf32>
      tpu.vector_store %arg9[%c0_44, %c0_45, %c0_46], %94 {strides = array<i32>} : memref<1x32x256xf32, #tpu.memory_space<vmem>>, vector<1x32x256xf32>,
    } else {
    }
    return
  }
  func.func @transform_0(%arg0: i32, %arg1: i32, %arg2: i32) -> (i32, i32, i32) {
    %c0_i32 = arith.constant 0 : i32
    %c0_i32_0 = arith.constant 0 : i32
    return %arg0, %c0_i32, %arg1 : i32, i32, i32
  }
  func.func @transform_1(%arg0: i32, %arg1: i32, %arg2: i32) -> (i32, i32, i32) {
    %c0_i32 = arith.constant 0 : i32
    %c0_i32_0 = arith.constant 0 : i32
    return %arg0, %c0_i32, %arg1 : i32, i32, i32
  }
  func.func @transform_2(%arg0: i32, %arg1: i32, %arg2: i32) -> (i32, i32, i32) {
    %c0_i32 = arith.constant 0 : i32
    %c0_i32_0 = arith.constant 0 : i32
    return %arg0, %c0_i32, %arg2 : i32, i32, i32
  }
  func.func @transform_3(%arg0: i32, %arg1: i32, %arg2: i32) -> (i32, i32, i32) {
    %c0_i32 = arith.constant 0 : i32
    %c0_i32_0 = arith.constant 0 : i32
    return %arg0, %c0_i32, %arg2 : i32, i32, i32
  }
  func.func @transform_4(%arg0: i32, %arg1: i32, %arg2: i32) -> (i32, i32) {
    %c0_i32 = arith.constant 0 : i32
    %c0_i32_0 = arith.constant 0 : i32
    %c0_i32_1 = arith.constant 0 : i32
    return %c0_i32, %c0_i32_0 : i32, i32
  }
  func.func @transform_5(%arg0: i32, %arg1: i32, %arg2: i32) -> i32 {
    %c0_i32 = arith.constant 0 : i32
    %c0_i32_0 = arith.constant 0 : i32
    return %c0_i32 : i32
  }
  func.func @transform_6(%arg0: i32, %arg1: i32, %arg2: i32) -> (i32, i32, i32) {
    %c0_i32 = arith.constant 0 : i32
    %c0_i32_0 = arith.constant 0 : i32
    return %arg0, %c0_i32, %arg1 : i32, i32, i32
  }
}

</mosaic_0001>

<llo_original>
// kernel: spatial_deps_local_guide.1
$region0: #{spatial_deps_local_guide.1}
  #allocation0 [shape = 'u32[]', space=smem, size = 0x4, offset = 0x4, fixed_abs, tag = 'smem constant byte address 0x4 - core index']
  #allocation1 [shape = 'u32[144,128]{1,0:T(1,128)}', space=vmem, size = 0x12000, scoped, tag = 'internal scratch']
  #allocation2 [shape = 'f32[1,256]{1,0:T(1,128)}', space=vmem, size = 0x400, scoped, tag = 'scratch operand']
  #allocation3 [shape = 'f32[40,256]{1,0:T(8,128)}', space=vmem, size = 0xa000, scoped, tag = 'scratch operand']
  #allocation4 [shape = 'f32[1]{0:T(128)S(6)}', space=smem, size = 0x200, scoped, tag = 'scoped memory for spatial_deps_local_guide.1']
  %s0 = inlined_call_operand.vmem [shape: f32[2,32,256], index: 0, kind: input, shape index: {}, may-alias: {0,2}]
  %s1 = inlined_call_operand.vmem [shape: f32[2,1,256], index: 1, kind: input, shape index: {}, may-alias: {1,3}]
  %s2 = inlined_call_operand.vmem [shape: f32[2,32,256], index: 2, kind: input, shape index: {}, may-alias: {0,2}]
  %s3 = inlined_call_operand.vmem [shape: f32[2,1,256], index: 3, kind: input, shape index: {}, may-alias: {1,3}]
  %s4 = inlined_call_operand.vmem [shape: bf16[72,40], index: 4, kind: input, shape index: {}]
  %s5 = inlined_call_operand.<no memory space> [shape: f32[1], index: 5, kind: input, shape index: {}]
  %s6 = inlined_call_operand.vmem [shape: f32[2,32,256], index: 6, kind: output, shape index: {}]
  %s7 = sld [smem:[#allocation0]]
  $region65: #{spatial_deps_local_guide.1} parent=0
    _
  %s9 = ssub.s32 1, %s7
  %s10 = scalar_select 0, %s9, %s7
  %11 = sst [smem:[#allocation4]] %s5
  loop: start=0, step=1, limit=4
  $region2: #{spatial_deps_local_guide.1} parent=0 // loop_pre_header
    _
  $region3: #{spatial_deps_local_guide.1} parent=0 // loop_header
    %s13 = sphi 0, %s17
    %p14 = scmp.ge.s32.totalorder %s13, 4
    %s20 = sphi 0, %s39
    %s21 = sphi 0, %s35
    %s22 = sphi 0, %s31
    %s23 = sphi 0, %s20
    %s24 = sphi 0, %s21
    %s25 = sphi 0, %s22
    %s26 = sphi 0, %s23
    %s27 = sphi 0, %s24
    %s28 = sphi 0, %s25
    %s44 = sphi 0, %s46
    %s47 = sphi 0, %s44
    %s48 = sphi 0, %s47
    %s64 = sphi 0, %s48
    %s72 = sphi 0, %s74
    %s75 = sphi 0, %s72
    %s76 = sphi 0, %s75
    %s92 = sphi 0, %s76
    %s100 = sphi 0, %s102
    %s103 = sphi 0, %s100
    %s104 = sphi 0, %s103
    %s120 = sphi 0, %s104
    %s128 = sphi 0, %s130
    %s131 = sphi 0, %s128
    %s132 = sphi 0, %s131
    %s148 = sphi 0, %s132
    %s152 = sphi 0, %s152
    %s154 = sphi 0, %s152
    %s155 = sphi 0, %s154
    %s169 = sphi 0, %s155
    %s173 = sphi 0, %s173
    %s175 = sphi 0, %s173
    %s176 = sphi 0, %s175
    %s190 = sphi 0, %s176
    %s198 = sphi 0, %s200
    %s201 = sphi 0, %s198
    %s202 = sphi 0, %s201
    %s218 = sphi 0, %s202
  $region4: #{spatial_deps_local_guide.1} parent=0 // loop_header_branch
    %16 = sbr.rel (%p14) target = $region8
  $region5: #{spatial_deps_local_guide.1} parent=0 // loop_body
    %s18 = ssub.s32 %s13, 1
    %s19 = ssub.s32 %s13, 2
    %s29 = sadd.s32 1, %s22
    %p30 = scmp.ge.s32.totalorder %s29, 1
    %s31 = scalar_select %p30, 0, %s29
    %s32 = sadd.s32 1, %s21
    %s33 = scalar_select %p30, %s32, %s21
    %p34 = scmp.ge.s32.totalorder %s33, 1
    %s35 = scalar_select %p34, 0, %s33
    %s36 = sadd.s32 1, %s20
    %s37 = scalar_select %p34, %s36, %s20
    %p38 = scmp.ge.s32.totalorder %s37, 2
    %s39 = scalar_select %p38, 0, %s37
    %s40 = ssub.s32 %s20, %s39
    %s41 = ssub.s32 %s21, %s35
    %s42 = sor.u32 %s40, %s41
    %p43 = scmp.eq.s32.totalorder %s42, 0
    %s45 = sadd.s32 %s44, 1
    %s46 = scalar_select %p43, %s44, %s45
    %p49 = pneg %p43
    %p50 = scmp.eq.s32.totalorder %s13, 1
    %p51 = por %p49, %p50
    %p52 = scmp.ne.s32.totalorder %s44, %s47
    %p53 = scmp.eq.s32.totalorder %s13, 0
    %p54 = por %p52, %p53
    %p55 = scmp.ne.s32.totalorder %s44, %s47
    %p56 = scmp.eq.s32.totalorder %s18, 1
    %p57 = por %p55, %p56
    %p58 = scmp.ne.s32.totalorder %s47, %s48
    %p59 = scmp.eq.s32.totalorder %s18, 0
    %p60 = por %p58, %p59
    %p61 = scmp.ne.s32.totalorder %s47, %s48
    %p62 = scmp.eq.s32.totalorder %s19, 1
    %p63 = por %p61, %p62
    %p65 = scmp.ne.s32.totalorder %s48, %s64
    %p66 = scmp.eq.s32.totalorder %s19, 0
    %p67 = por %p65, %p66
    %s68 = ssub.s32 %s20, %s39
    %s69 = ssub.s32 %s21, %s35
    %s70 = sor.u32 %s68, %s69
    %p71 = scmp.eq.s32.totalorder %s70, 0
    %s73 = sadd.s32 %s72, 1
    %s74 = scalar_select %p71, %s72, %s73
    %p77 = pneg %p71
    %p78 = scmp.eq.s32.totalorder %s13, 1
    %p79 = por %p77, %p78
    %p80 = scmp.ne.s32.totalorder %s72, %s75
    %p81 = scmp.eq.s32.totalorder %s13, 0
    %p82 = por %p80, %p81
    %p83 = scmp.ne.s32.totalorder %s72, %s75
    %p84 = scmp.eq.s32.totalorder %s18, 1
    %p85 = por %p83, %p84
    %p86 = scmp.ne.s32.totalorder %s75, %s76
    %p87 = scmp.eq.s32.totalorder %s18, 0
    %p88 = por %p86, %p87
    %p89 = scmp.ne.s32.totalorder %s75, %s76
    %p90 = scmp.eq.s32.totalorder %s19, 1
    %p91 = por %p89, %p90
    %p93 = scmp.ne.s32.totalorder %s76, %s92
    %p94 = scmp.eq.s32.totalorder %s19, 0
    %p95 = por %p93, %p94
    %s96 = ssub.s32 %s20, %s39
    %s97 = ssub.s32 %s22, %s31
    %s98 = sor.u32 %s96, %s97
    %p99 = scmp.eq.s32.totalorder %s98, 0
    %s101 = sadd.s32 %s100, 1
    %s102 = scalar_select %p99, %s100, %s101
    %p105 = pneg %p99
    %p106 = scmp.eq.s32.totalorder %s13, 1
    %p107 = por %p105, %p106
    %p108 = scmp.ne.s32.totalorder %s100, %s103
    %p109 = scmp.eq.s32.totalorder %s13, 0
    %p110 = por %p108, %p109
    %p111 = scmp.ne.s32.totalorder %s100, %s103
    %p112 = scmp.eq.s32.totalorder %s18, 1
    %p113 = por %p111, %p112
    %p114 = scmp.ne.s32.totalorder %s103, %s104
    %p115 = scmp.eq.s32.totalorder %s18, 0
    %p116 = por %p114, %p115
    %p117 = scmp.ne.s32.totalorder %s103, %s104
    %p118 = scmp.eq.s32.totalorder %s19, 1
    %p119 = por %p117, %p118
    %p121 = scmp.ne.s32.totalorder %s104, %s120
    %p122 = scmp.eq.s32.totalorder %s19, 0
    %p123 = por %p121, %p122
    %s124 = ssub.s32 %s20, %s39
    %s125 = ssub.s32 %s22, %s31
    %s126 = sor.u32 %s124, %s125
    %p127 = scmp.eq.s32.totalorder %s126, 0
    %s129 = sadd.s32 %s128, 1
    %s130 = scalar_select %p127, %s128, %s129
    %p133 = pneg %p127
    %p134 = scmp.eq.s32.totalorder %s13, 1
    %p135 = por %p133, %p134
    %p136 = scmp.ne.s32.totalorder %s128, %s131
    %p137 = scmp.eq.s32.totalorder %s13, 0
    %p138 = por %p136, %p137
    %p139 = scmp.ne.s32.totalorder %s128, %s131
    %p140 = scmp.eq.s32.totalorder %s18, 1
    %p141 = por %p139, %p140
    %p142 = scmp.ne.s32.totalorder %s131, %s132
    %p143 = scmp.eq.s32.totalorder %s18, 0
    %p144 = por %p142, %p143
    %p145 = scmp.ne.s32.totalorder %s131, %s132
    %p146 = scmp.eq.s32.totalorder %s19, 1
    %p147 = por %p145, %p146
    %p149 = scmp.ne.s32.totalorder %s132, %s148
    %p150 = scmp.eq.s32.totalorder %s19, 0
    %p151 = por %p149, %p150
    %s153 = sadd.s32 %s152, 1
    %p156 = scmp.eq.s32.totalorder %s13, 1
    %p157 = scmp.ne.s32.totalorder %s152, %s154
    %p158 = scmp.eq.s32.totalorder %s13, 0
    %p159 = por %p157, %p158
    %p160 = scmp.ne.s32.totalorder %s152, %s154
    %p161 = scmp.eq.s32.totalorder %s18, 1
    %p162 = por %p160, %p161
    %p163 = scmp.ne.s32.totalorder %s154, %s155
    %p164 = scmp.eq.s32.totalorder %s18, 0
    %p165 = por %p163, %p164
    %p166 = scmp.ne.s32.totalorder %s154, %s155
    %p167 = scmp.eq.s32.totalorder %s19, 1
    %p168 = por %p166, %p167
    %p170 = scmp.ne.s32.totalorder %s155, %s169
    %p171 = scmp.eq.s32.totalorder %s19, 0
    %p172 = por %p170, %p171
    %s174 = sadd.s32 %s173, 1
    %p177 = scmp.eq.s32.totalorder %s13, 1
    %p178 = scmp.ne.s32.totalorder %s173, %s175
    %p179 = scmp.eq.s32.totalorder %s13, 0
    %p180 = por %p178, %p179
    %p181 = scmp.ne.s32.totalorder %s173, %s175
    %p182 = scmp.eq.s32.totalorder %s18, 1
    %p183 = por %p181, %p182
    %p184 = scmp.ne.s32.totalorder %s175, %s176
    %p185 = scmp.eq.s32.totalorder %s18, 0
    %p186 = por %p184, %p185
    %p187 = scmp.ne.s32.totalorder %s175, %s176
    %p188 = scmp.eq.s32.totalorder %s19, 1
    %p189 = por %p187, %p188
    %p191 = scmp.ne.s32.totalorder %s176, %s190
    %p192 = scmp.eq.s32.totalorder %s19, 0
    %p193 = por %p191, %p192
    %s194 = ssub.s32 %s20, %s39
    %s195 = ssub.s32 %s21, %s35
    %s196 = sor.u32 %s194, %s195
    %p197 = scmp.eq.s32.totalorder %s196, 0
    %s199 = sadd.s32 %s198, 1
    %s200 = scalar_select %p197, %s198, %s199
    %p203 = pneg %p197
    %p204 = scmp.eq.s32.totalorder %s13, 1
    %p205 = por %p203, %p204
    %p206 = scmp.ne.s32.totalorder %s198, %s201
    %p207 = scmp.eq.s32.totalorder %s13, 0
    %p208 = por %p206, %p207
    %p209 = scmp.ne.s32.totalorder %s198, %s201
    %p210 = scmp.eq.s32.totalorder %s18, 1
    %p211 = por %p209, %p210
    %p212 = scmp.ne.s32.totalorder %s201, %s202
    %p213 = scmp.eq.s32.totalorder %s18, 0
    %p214 = por %p212, %p213
    %p215 = scmp.ne.s32.totalorder %s201, %s202
    %p216 = scmp.eq.s32.totalorder %s19, 1
    %p217 = por %p215, %p216
    %p219 = scmp.ne.s32.totalorder %s202, %s218
    %p220 = scmp.eq.s32.totalorder %s19, 0
    %p221 = por %p219, %p220
    %p222 = scmp.le.s32.totalorder 1, %s13
    %p223 = scmp.lt.s32.totalorder %s13, 3
    %p224 = pnand %p222, %p223
    %p225 = pneg %p224
    // Predicated region
    $region9: #{spatial_deps_local_guide.1} parent=5 // pred_check
      _
    $region10: #{spatial_deps_local_guide.1} parent=5 // pred_check_branch
      %227 = sbr.rel (%p224) target = $region12
    $region11: #{spatial_deps_local_guide.1} parent=5 // pred_region
      %s228 = ssub.s32 %s13, 1
      // Predicated region
      $region13: #{spatial_deps_local_guide.1} parent=11 // pred_check
        %p229 = pneg %p165
      $region14: #{spatial_deps_local_guide.1} parent=11 // pred_check_branch
        %231 = sbr.rel (%p229) target = $region16
      $region15: #{spatial_deps_local_guide.1} parent=11 // pred_region
        _
      $region16: #{spatial_deps_local_guide.1} parent=11 // pred_fallthru
        _
      // Predicated region
      $region17: #{spatial_deps_local_guide.1} parent=11 // pred_check
        %p232 = pneg %p186
      $region18: #{spatial_deps_local_guide.1} parent=11 // pred_check_branch
        %234 = sbr.rel (%p232) target = $region20
      $region19: #{spatial_deps_local_guide.1} parent=11 // pred_region
        _
      $region20: #{spatial_deps_local_guide.1} parent=11 // pred_fallthru
        _
    $region12: #{spatial_deps_local_guide.1} parent=5 // pred_fallthru
      _
    %p235 = scmp.lt.s32.totalorder %s13, 2
    // Predicated region
    $region21: #{spatial_deps_local_guide.1} parent=5 // pred_check
      %p236 = pneg %p235
    $region22: #{spatial_deps_local_guide.1} parent=5 // pred_check_branch
      %238 = sbr.rel (%p236) target = $region24
    $region23: #{spatial_deps_local_guide.1} parent=5 // pred_region
      // Predicated region
      $region25: #{spatial_deps_local_guide.1} parent=23 // pred_check
        %p239 = pneg %p54
      $region26: #{spatial_deps_local_guide.1} parent=23 // pred_check_branch
        %241 = sbr.rel (%p239) target = $region28
      $region27: #{spatial_deps_local_guide.1} parent=23 // pred_region
        %s242 = smul.u32 2, %s21
        %p243 = scmp.lt.s32.totalorder %s20, 1
        %s244 = scalar_select %p243, %s20, 1
        %p245 = scmp.lt.s32.totalorder %s242, 1
        %s246 = scalar_select %p245, %s242, 1
        %s247 = smul.addr %s244, 8
        %s248 = sadd.s32 %s246, %s247
        %s249 = smul.addr %s248, 8
        %s250 = scalar_lea.vmem %s0, %s249
        %s251 = smul.u32 2, %s21
      $region28: #{spatial_deps_local_guide.1} parent=23 // pred_fallthru
        _
      // Predicated region
      $region29: #{spatial_deps_local_guide.1} parent=23 // pred_check
        %p252 = pneg %p82
      $region30: #{spatial_deps_local_guide.1} parent=23 // pred_check_branch
        %254 = sbr.rel (%p252) target = $region32
      $region31: #{spatial_deps_local_guide.1} parent=23 // pred_region
        %s255 = smul.u32 2, %s21
        %p256 = scmp.lt.s32.totalorder %s20, 1
        %s257 = scalar_select %p256, %s20, 1
        %p258 = scmp.lt.s32.totalorder %s255, 1
        %s259 = scalar_select %p258, %s255, 1
        %s260 = smul.addr %s257, 2
        %s261 = sadd.s32 %s259, %s260
        %s262 = scalar_lea.vmem %s1, %s261
        %s263 = smul.u32 2, %s21
      $region32: #{spatial_deps_local_guide.1} parent=23 // pred_fallthru
        _
      // Predicated region
      $region33: #{spatial_deps_local_guide.1} parent=23 // pred_check
        %p264 = pneg %p110
      $region34: #{spatial_deps_local_guide.1} parent=23 // pred_check_branch
        %266 = sbr.rel (%p264) target = $region36
      $region35: #{spatial_deps_local_guide.1} parent=23 // pred_region
        %s267 = smul.u32 2, %s22
        %p268 = scmp.lt.s32.totalorder %s20, 1
        %s269 = scalar_select %p268, %s20, 1
        %p270 = scmp.lt.s32.totalorder %s267, 1
        %s271 = scalar_select %p270, %s267, 1
        %s272 = smul.addr %s269, 8
        %s273 = sadd.s32 %s271, %s272
        %s274 = smul.addr %s273, 8
        %s275 = scalar_lea.vmem %s2, %s274
        %s276 = smul.u32 2, %s22
      $region36: #{spatial_deps_local_guide.1} parent=23 // pred_fallthru
        _
      // Predicated region
      $region37: #{spatial_deps_local_guide.1} parent=23 // pred_check
        %p277 = pneg %p138
      $region38: #{spatial_deps_local_guide.1} parent=23 // pred_check_branch
        %279 = sbr.rel (%p277) target = $region40
      $region39: #{spatial_deps_local_guide.1} parent=23 // pred_region
        %s280 = smul.u32 2, %s22
        %p281 = scmp.lt.s32.totalorder %s20, 1
        %s282 = scalar_select %p281, %s20, 1
        %p283 = scmp.lt.s32.totalorder %s280, 1
        %s284 = scalar_select %p283, %s280, 1
        %s285 = smul.addr %s282, 2
        %s286 = sadd.s32 %s284, %s285
        %s287 = scalar_lea.vmem %s3, %s286
        %s288 = smul.u32 2, %s22
      $region40: #{spatial_deps_local_guide.1} parent=23 // pred_fallthru
        _
    $region24: #{spatial_deps_local_guide.1} parent=5 // pred_fallthru
      _
    %p289 = scmp.le.s32.totalorder 1, %s13
    %p290 = scmp.lt.s32.totalorder %s13, 3
    %p291 = pnand %p289, %p290
    %p292 = pneg %p291
    // Predicated region
    $region41: #{spatial_deps_local_guide.1} parent=5 // pred_check
      _
    $region42: #{spatial_deps_local_guide.1} parent=5 // pred_check_branch
      %294 = sbr.rel (%p291) target = $region44
    $region43: #{spatial_deps_local_guide.1} parent=5 // pred_region
      %s295 = ssub.s32 %s13, 1
      %s296 = smul.u32 2, %s24
      %p297 = scmp.lt.s32.totalorder %s23, 1
      %s298 = scalar_select %p297, %s23, 1
      %p299 = scmp.lt.s32.totalorder %s296, 1
      %s300 = scalar_select %p299, %s296, 1
      %s301 = smul.addr %s298, 8
      %s302 = sadd.s32 %s300, %s301
      %s303 = smul.addr %s302, 8
      %s304 = scalar_lea.vmem %s0, %s303
      %p305 = pneg %p60
      %p306 = pneg %p57
      %s307 = smul.u32 2, %s24
      %p308 = scmp.lt.s32.totalorder %s23, 1
      %s309 = scalar_select %p308, %s23, 1
      %p310 = scmp.lt.s32.totalorder %s307, 1
      %s311 = scalar_select %p310, %s307, 1
      %s312 = smul.addr %s309, 2
      %s313 = sadd.s32 %s311, %s312
      %s314 = scalar_lea.vmem %s1, %s313
      %p315 = pneg %p88
      %p316 = pneg %p85
      %s317 = smul.u32 2, %s25
      %p318 = scmp.lt.s32.totalorder %s23, 1
      %s319 = scalar_select %p318, %s23, 1
      %p320 = scmp.lt.s32.totalorder %s317, 1
      %s321 = scalar_select %p320, %s317, 1
      %s322 = smul.addr %s319, 8
      %s323 = sadd.s32 %s321, %s322
      %s324 = smul.addr %s323, 8
      %s325 = scalar_lea.vmem %s2, %s324
      %p326 = pneg %p116
      %p327 = pneg %p113
      %s328 = smul.u32 2, %s25
      %p329 = scmp.lt.s32.totalorder %s23, 1
      %s330 = scalar_select %p329, %s23, 1
      %p331 = scmp.lt.s32.totalorder %s328, 1
      %s332 = scalar_select %p331, %s328, 1
      %s333 = smul.addr %s330, 2
      %s334 = sadd.s32 %s332, %s333
      %s335 = scalar_lea.vmem %s3, %s334
      %p336 = pneg %p144
      %p337 = pneg %p141
      %p338 = pneg %p165
      %p339 = pneg %p162
      %p340 = pneg %p186
      %p341 = pneg %p183
      %p342 = pneg %p214
      %p343 = pneg %p211
      %s344 = smul.u32 2, %s24
      %p345 = scmp.lt.s32.totalorder %s23, 1
      %s346 = scalar_select %p345, %s23, 1
      %p347 = scmp.lt.s32.totalorder %s344, 1
      %s348 = scalar_select %p347, %s344, 1
      %s349 = smul.addr %s346, 8
      %s350 = sadd.s32 %s348, %s349
      %s351 = smul.addr %s350, 8
      %s352 = scalar_lea.vmem %s6, %s351
      %s353 = smul.u32 2, %s24
      %p354 = scmp.lt.s32.totalorder %s23, 1
      %s355 = scalar_select %p354, %s23, 1
      %p356 = scmp.lt.s32.totalorder %s353, 1
      %s357 = scalar_select %p356, %s353, 1
      %s358 = smul.addr %s355, 8
      %s359 = sadd.s32 %s357, %s358
      %s360 = smul.addr %s359, 8
      %s361 = scalar_lea.vmem %s0, %s360
      %s362 = smul.u32 2, %s24
      %s363 = smul.u32 2, %s24
      %p364 = scmp.lt.s32.totalorder %s23, 1
      %s365 = scalar_select %p364, %s23, 1
      %p366 = scmp.lt.s32.totalorder %s363, 1
      %s367 = scalar_select %p366, %s363, 1
      %s368 = smul.addr %s365, 2
      %s369 = sadd.s32 %s367, %s368
      %s370 = scalar_lea.vmem %s1, %s369
      %s371 = smul.u32 2, %s24
      %s372 = smul.u32 2, %s25
      %p373 = scmp.lt.s32.totalorder %s23, 1
      %s374 = scalar_select %p373, %s23, 1
      %p375 = scmp.lt.s32.totalorder %s372, 1
      %s376 = scalar_select %p375, %s372, 1
      %s377 = smul.addr %s374, 8
      %s378 = sadd.s32 %s376, %s377
      %s379 = smul.addr %s378, 8
      %s380 = scalar_lea.vmem %s2, %s379
      %s381 = smul.u32 2, %s25
      %s382 = smul.u32 2, %s25
      %p383 = scmp.lt.s32.totalorder %s23, 1
      %s384 = scalar_select %p383, %s23, 1
      %p385 = scmp.lt.s32.totalorder %s382, 1
      %s386 = scalar_select %p385, %s382, 1
      %s387 = smul.addr %s384, 2
      %s388 = sadd.s32 %s386, %s387
      %s389 = scalar_lea.vmem %s3, %s388
      %s390 = smul.u32 2, %s25
      %s391 = smul.u32 2, %s24
      %p392 = scmp.lt.s32.totalorder %s23, 1
      %s393 = scalar_select %p392, %s23, 1
      %p394 = scmp.lt.s32.totalorder %s391, 1
      %s395 = scalar_select %p394, %s391, 1
      %s396 = smul.addr %s393, 8
      %s397 = sadd.s32 %s395, %s396
      %s398 = smul.addr %s397, 8
      %s399 = scalar_lea.vmem %s6, %s398
      %s400 = smul.u32 2, %s24
      %p402 = scmp.eq.s32.totalorder %s25, 0
      // Predicated region
      $region45: #{spatial_deps_local_guide.1} parent=43 // pred_check
        %p403 = pneg %p402
      $region46: #{spatial_deps_local_guide.1} parent=43 // pred_check_branch
        %405 = sbr.rel (%p403) target = $region48
      $region47: #{spatial_deps_local_guide.1} parent=43 // pred_region
        %v406 = vlaneseq
        %vm407 = vcmp.ge.s32.totalorder %v406, 0
        %vm408 = vcmp.lt.s32.totalorder %v406, 256
        %vm409 = vmand %vm407, %vm408
        %410 = vst.msk [vmem:[#allocation2] sm:$0x3] %vm409, -inf
        %411 = vst [vmem:[#allocation3] sm:$0xff] 0.0
        %412 = vst [vmem:[#allocation3 + $0x8] sm:$0xff] 0.0
        %413 = vst [vmem:[#allocation3 + $0x10] sm:$0xff] 0.0
        %414 = vst [vmem:[#allocation3 + $0x18] sm:$0xff] 0.0
        %415 = vst [vmem:[#allocation3 + $0x20] sm:$0xff] 0.0
        %416 = vst [vmem:[#allocation3 + $0x28] sm:$0xff] 0.0
        %417 = vst [vmem:[#allocation3 + $0x30] sm:$0xff] 0.0
        %418 = vst [vmem:[#allocation3 + $0x38] sm:$0xff] 0.0
        %419 = vst [vmem:[#allocation3 + $0x40] sm:$0xff] 0.0
        %420 = vst [vmem:[#allocation3 + $0x48] sm:$0xff] 0.0
      $region48: #{spatial_deps_local_guide.1} parent=43 // pred_fallthru
        _
      %v421 = vld [vmem:[%s389] sm:$0x3]
      %v422 = vxor.u32 %v421, 2147483648
      %v423 = vmul.f32 %v422, 1.442695
      %v424 = vpow.pop %v423
      %v425 = vadd.f32 %v424, 1.0
      %v426 = vrcp.pop %v425
      %v427 = vmul.f32 1.0, %v426
      %v428 = vadd.f32 %v427, 1.0
      %v429 = vlaneseq
      %v430 = vshrl.u32 %v429, 7
      %v431 = vld [vmem:[%s380] sm:$0xff]
      %v432 = vld [vmem:[%s380 + $0x8] sm:$0xff]
      %v433 = vld [vmem:[%s380 + $0x10] sm:$0xff]
      %v434 = vld [vmem:[%s380 + $0x18] sm:$0xff]
      %v435 = vld [vmem:[%s380 + $0x20] sm:$0xff]
      %v436 = vld [vmem:[%s380 + $0x28] sm:$0xff]
      %v437 = vld [vmem:[%s380 + $0x30] sm:$0xff]
      %v438 = vld [vmem:[%s380 + $0x38] sm:$0xff]
      %v440 = vlaneseq
      %v441 = vshrl.u32 %v440, 7
      %v442 = vsub.s32 0, %v441
      %v443 = vrot.slane %v428, %v442
      %v444 = vlaneseq
      %v445 = vshrl.u32 %v444, 7
      %v446 = vsub.s32 1, %v445
      %v447 = vrot.slane %v428, %v446
      %v450 = vmul.f32 %v431, %v443
      %v451 = vmul.f32 %v432, %v447
      %v452 = vmul.f32 %v433, %v443
      %v453 = vmul.f32 %v434, %v447
      %v454 = vmul.f32 %v435, %v443
      %v455 = vmul.f32 %v436, %v447
      %v456 = vmul.f32 %v437, %v443
      %v457 = vmul.f32 %v438, %v447
      %vm458 = vcmp.eq.s32.totalorder %v430, 0
      %v459 = vsel %vm458, %v443, 0.0
      %v460 = vsel %vm458, %v447, 0.0
      %v461 = vpack.c.bf16 %v452, %v450
      %v462 = vpack.c.bf16 %v453, %v451
      %v463 = vpack.c.bf16 %v456, %v454
      %v464 = vpack.c.bf16 %v457, %v455
      %v465 = vpack.c.bf16 %v459, %v459
      %v466 = vpack.c.bf16 %v460, %v460
      %v467 = vld [vmem:[%s4] sm:$0xf]
      %v468 = vld [vmem:[%s4 + $0x4] sm:$0xf]
      %v469 = vld [vmem:[%s4 + $0x8] sm:$0xf]
      %v470 = vld [vmem:[%s4 + $0xc] sm:$0xf]
      %v471 = vld [vmem:[%s4 + $0x10] sm:$0xf]
      %v472 = vld [vmem:[%s4 + $0x14] sm:$0xf]
      %v473 = vld [vmem:[%s4 + $0x18] sm:$0xf]
      %v474 = vld [vmem:[%s4 + $0x1c] sm:$0xf]
      %v475 = vld [vmem:[%s4 + $0x20] sm:$0xf]
      %v485 = vunpack.c.l.b16 %v467
      %v486 = vunpack.c.l.b16 %v468
      %v487 = vunpack.c.l.b16 %v469
      %v488 = vunpack.c.l.b16 %v470
      %v489 = vunpack.c.l.b16 %v471
      %v490 = vunpack.c.l.b16 %v472
      %v491 = vunpack.c.l.b16 %v473
      %v492 = vunpack.c.l.b16 %v474
      %v493 = vunpack.c.l.b16 %v475
      %v494 = vpack.c.b16 %v486, %v485
      %v495 = vpack.c.b16 %v488, %v487
      %v496 = vpack.c.b16 %v490, %v489
      %v497 = vpack.c.b16 %v492, %v491
      %v498 = vpack.c.b16 %v493, %v493
      %vm499 = vcmask 326656
      %v501 = vsel %vm499, %v494, 0
      %v504 = vsel %vm499, %v495, 0
      %v507 = vsel %vm499, %v496, 0
      %v510 = vsel %vm499, %v497, 0
      %v513 = vsel %vm499, %v498, 0
      %vm515 = vcmask 1043456
      %v517 = vsel %vm515, %v465, 0
      %v520 = vsel %vm515, %v466, 0
      %522 = vmatprep.subr.bf16.mxu0 %v462
      %523 = vmatpush1.bf16.msra.mxu0 %v461
      %524 = vmatprep.subr.bf16.mxu0 %v464
      %525 = vmatpush1.bf16.msra.mxu0 %v463
      %526 = vmatprep.subr.bf16.mxu0 %v520
      %527 = vmatpush1.bf16.msra.mxu0 %v517
      %528 = vmatprep.subr.bf16.mxu0 0
      %529 = vmatpush1.bf16.msra.mxu0 0
      %530 = vmatprep.subr.bf16.mxu0 0
      %531 = vmatpush1.bf16.msra.mxu0 0
      %532 = vmatprep.subr.bf16.mxu0 0
      %533 = vmatpush1.bf16.msra.mxu0 0
      %534 = vmatprep.subr.bf16.mxu0 0
      %535 = vmatpush1.bf16.msra.mxu0 0
      %536 = vmatprep.subr.bf16.mxu0 0
      %537 = vmatpush1.bf16.msra.mxu0 0
      %538 = vmatprep.subr.bf16.mxu0 0
      %539 = vmatpush1.bf16.msra.mxu0 0
      %540 = vmatprep.subr.bf16.mxu0 0
      %541 = vmatpush1.bf16.msra.mxu0 0
      %542 = vmatprep.subr.bf16.mxu0 0
      %543 = vmatpush1.bf16.msra.mxu0 0
      %544 = vmatprep.subr.bf16.mxu0 0
      %545 = vmatpush1.bf16.msra.mxu0 0
      %546 = vmatprep.subr.bf16.mxu0 0
      %547 = vmatpush1.bf16.msra.mxu0 0
      %548 = vmatprep.subr.bf16.mxu0 0
      %549 = vmatpush1.bf16.msra.mxu0 0
      %550 = vmatprep.subr.bf16.mxu0 0
      %551 = vmatpush1.bf16.msra.mxu0 0
      %552 = vmatprep.subr.bf16.mxu0 0
      %553 = vmatpush1.bf16.msra.mxu0 0
      %554 = vmatprep.mubr.bf16.mxu0 0
      %555 = vmatmul.mubr.bf16.gmra.mrb[0].mxu0 %v501
      %v556 = vpop.f32.mrb[0].mxu0
      %v557 = vadd.f32 0.0, %v556
      %v558 = vpop.f32.mrb[0].mxu0
      %v559 = vadd.f32 0.0, %v558
      %v560 = vpop.f32.mrb[0].mxu0
      %v561 = vadd.f32 0.0, %v560
      %v562 = vpop.f32.mrb[0].mxu0
      %v563 = vadd.f32 0.0, %v562
      %564 = vmatprep.mubr.bf16.mxu0 0
      %565 = vmatmul.mubr.bf16.gmra.mrb[0].mxu0 %v504
      %v566 = vpop.f32.mrb[0].mxu0
      %v567 = vadd.f32 0.0, %v566
      %v568 = vpop.f32.mrb[0].mxu0
      %v569 = vadd.f32 0.0, %v568
      %v570 = vpop.f32.mrb[0].mxu0
      %v571 = vadd.f32 0.0, %v570
      %v572 = vpop.f32.mrb[0].mxu0
      %v573 = vadd.f32 0.0, %v572
      %574 = vmatprep.mubr.bf16.mxu0 0
      %575 = vmatmul.mubr.bf16.gmra.mrb[0].mxu0 %v507
      %v576 = vpop.f32.mrb[0].mxu0
      %v577 = vadd.f32 0.0, %v576
      %v578 = vpop.f32.mrb[0].mxu0
      %v579 = vadd.f32 0.0, %v578
      %v580 = vpop.f32.mrb[0].mxu0
      %v581 = vadd.f32 0.0, %v580
      %v582 = vpop.f32.mrb[0].mxu0
      %v583 = vadd.f32 0.0, %v582
      %584 = vmatprep.mubr.bf16.mxu0 0
      %585 = vmatmul.mubr.bf16.gmra.mrb[0].mxu0 %v510
      %v586 = vpop.f32.mrb[0].mxu0
      %v587 = vadd.f32 0.0, %v586
      %v588 = vpop.f32.mrb[0].mxu0
      %v589 = vadd.f32 0.0, %v588
      %v590 = vpop.f32.mrb[0].mxu0
      %v591 = vadd.f32 0.0, %v590
      %v592 = vpop.f32.mrb[0].mxu0
      %v593 = vadd.f32 0.0, %v592
      %594 = vmatprep.mubr.bf16.mxu0 0
      %595 = vmatmul.mubr.bf16.gmra.mrb[0].mxu0 %v513
      %v596 = vpop.f32.mrb[0].mxu0
      %v597 = vadd.f32 0.0, %v596
      %v598 = vpop.f32.mrb[0].mxu0
      %v599 = vadd.f32 0.0, %v598
      %v600 = vpop.f32.mrb[0].mxu0
      %v601 = vpop.f32.mrb[0].mxu0
      %602 = vdwg.mxu0
      %v603 = vld [vmem:[%s370] sm:$0x3]
      %v604 = vxor.u32 %v603, 2147483648
      %v605 = vmul.f32 %v604, 1.442695
      %v606 = vpow.pop %v605
      %v607 = vadd.f32 %v606, 1.0
      %v608 = vrcp.pop %v607
      %v609 = vmul.f32 1.0, %v608
      %v610 = vadd.f32 %v609, 1.0
      %v611 = vld [vmem:[%s361] sm:$0xff]
      %v612 = vld [vmem:[%s361 + $0x8] sm:$0xff]
      %v613 = vld [vmem:[%s361 + $0x10] sm:$0xff]
      %v614 = vld [vmem:[%s361 + $0x18] sm:$0xff]
      %v615 = vld [vmem:[%s361 + $0x20] sm:$0xff]
      %v616 = vld [vmem:[%s361 + $0x28] sm:$0xff]
      %v617 = vld [vmem:[%s361 + $0x30] sm:$0xff]
      %v618 = vld [vmem:[%s361 + $0x38] sm:$0xff]
      %v620 = vlaneseq
      %v621 = vshrl.u32 %v620, 7
      %v622 = vsub.s32 0, %v621
      %v623 = vrot.slane %v610, %v622
      %v624 = vlaneseq
      %v625 = vshrl.u32 %v624, 7
      %v626 = vsub.s32 1, %v625
      %v627 = vrot.slane %v610, %v626
      %v630 = vmul.f32 %v611, %v623
      %v631 = vmul.f32 %v612, %v627
      %v632 = vmul.f32 %v613, %v623
      %v633 = vmul.f32 %v614, %v627
      %v634 = vmul.f32 %v615, %v623
      %v635 = vmul.f32 %v616, %v627
      %v636 = vmul.f32 %v617, %v623
      %v637 = vmul.f32 %v618, %v627
      %v638 = vsel %vm458, %v623, 0.0
      %v639 = vsel %vm458, %v627, 0.0
      %v640 = vpack.c.bf16 %v632, %v630
      %v641 = vpack.c.bf16 %v633, %v631
      %v642 = vpack.c.bf16 %v636, %v634
      %v643 = vpack.c.bf16 %v637, %v635
      %v644 = vpack.c.bf16 %v638, %v638
      %v645 = vpack.c.bf16 %v639, %v639
      %v646 = vpack.c.bf16 %v561, %v557
      %v647 = vpack.c.bf16 %v563, %v559
      %v648 = vpack.c.bf16 %v571, %v567
      %v649 = vpack.c.bf16 %v573, %v569
      %v650 = vpack.c.bf16 %v577, %v577
      %v651 = vpack.c.bf16 %v579, %v579
      %652 = vxpose.xlu0.c.b16.start [1/8] %v646, 128
      %653 = vxpose.xlu0.c.b16.cont [2/8] %v648, 128
      %654 = vxpose.xlu0.c.b16.cont [3/8] %v650, 128
      %655 = vxpose.xlu0.c.b16.cont [4/8] 0, 128
      %656 = vxpose.xlu0.c.b16.cont [5/8] 0, 128
      %657 = vxpose.xlu0.c.b16.cont [6/8] 0, 128
      %658 = vxpose.xlu0.c.b16.cont [7/8] 0, 128
      %659 = vxpose.xlu0.c.b16.end [8/8] 0, 128
      %v660 = vpop.trf.xlu0
      %v661 = vpop.trf.xlu0
      %v662 = vpop.trf.xlu0
      %v663 = vpop.trf.xlu0
      %v664 = vpop.trf.xlu0
      %v665 = vpop.trf.xlu0
      %v666 = vpop.trf.xlu0
      %v667 = vpop.trf.xlu0
      %668 = vxpose.xlu0.c.b16.start [1/8] %v647, 128
      %669 = vxpose.xlu0.c.b16.cont [2/8] %v649, 128
      %670 = vxpose.xlu0.c.b16.cont [3/8] %v651, 128
      %671 = vxpose.xlu0.c.b16.cont [4/8] 0, 128
      %672 = vxpose.xlu0.c.b16.cont [5/8] 0, 128
      %673 = vxpose.xlu0.c.b16.cont [6/8] 0, 128
      %674 = vxpose.xlu0.c.b16.cont [7/8] 0, 128
      %675 = vxpose.xlu0.c.b16.end [8/8] 0, 128
      %v676 = vpop.trf.xlu0
      %v677 = vpop.trf.xlu0
      %v678 = vpop.trf.xlu0
      %v679 = vpop.trf.xlu0
      %v680 = vpop.trf.xlu0
      %v681 = vpop.trf.xlu0
      %v682 = vpop.trf.xlu0
      %v683 = vpop.trf.xlu0
      %v685 = vsel %vm499, %v660, 0
      %v688 = vsel %vm499, %v661, 0
      %v691 = vsel %vm499, %v662, 0
      %v694 = vsel %vm499, %v663, 0
      %v697 = vsel %vm499, %v664, 0
      %v700 = vsel %vm499, %v665, 0
      %v703 = vsel %vm499, %v666, 0
      %v706 = vsel %vm499, %v667, 0
      %v709 = vsel %vm499, %v676, 0
      %v712 = vsel %vm499, %v677, 0
      %v715 = vsel %vm499, %v678, 0
      %v718 = vsel %vm499, %v679, 0
      %v721 = vsel %vm499, %v680, 0
      %v724 = vsel %vm499, %v681, 0
      %v727 = vsel %vm499, %v682, 0
      %v730 = vsel %vm499, %v683, 0
      %v733 = vsel %vm515, %v644, 0
      %v736 = vsel %vm515, %v645, 0
      %738 = vmatprep.subr.bf16.mxu0 %v641
      %739 = vmatpush1.bf16.msra.mxu0 %v640
      %740 = vmatprep.subr.bf16.mxu0 %v643
      %741 = vmatpush1.bf16.msra.mxu0 %v642
      %742 = vmatprep.subr.bf16.mxu0 %v736
      %743 = vmatpush1.bf16.msra.mxu0 %v733
      %744 = vmatprep.subr.bf16.mxu0 0
      %745 = vmatpush1.bf16.msra.mxu0 0
      %746 = vmatprep.subr.bf16.mxu0 0
      %747 = vmatpush1.bf16.msra.mxu0 0
      %748 = vmatprep.subr.bf16.mxu0 0
      %749 = vmatpush1.bf16.msra.mxu0 0
      %750 = vmatprep.subr.bf16.mxu0 0
      %751 = vmatpush1.bf16.msra.mxu0 0
      %752 = vmatprep.subr.bf16.mxu0 0
      %753 = vmatpush1.bf16.msra.mxu0 0
      %754 = vmatprep.subr.bf16.mxu0 0
      %755 = vmatpush1.bf16.msra.mxu0 0
      %756 = vmatprep.subr.bf16.mxu0 0
      %757 = vmatpush1.bf16.msra.mxu0 0
      %758 = vmatprep.subr.bf16.mxu0 0
      %759 = vmatpush1.bf16.msra.mxu0 0
      %760 = vmatprep.subr.bf16.mxu0 0
      %761 = vmatpush1.bf16.msra.mxu0 0
      %762 = vmatprep.subr.bf16.mxu0 0
      %763 = vmatpush1.bf16.msra.mxu0 0
      %764 = vmatprep.subr.bf16.mxu0 0
      %765 = vmatpush1.bf16.msra.mxu0 0
      %766 = vmatprep.subr.bf16.mxu0 0
      %767 = vmatpush1.bf16.msra.mxu0 0
      %768 = vmatprep.subr.bf16.mxu0 0
      %769 = vmatpush1.bf16.msra.mxu0 0
      %770 = vmatprep.mubr.bf16.mxu0 0
      %771 = vmatmul.mubr.bf16.gmra.mrb[0].mxu0 %v685
      %v772 = vpop.f32.mrb[0].mxu0
      %v773 = vadd.f32 0.0, %v772
      %v774 = vpop.f32.mrb[0].mxu0
      %v775 = vadd.f32 0.0, %v774
      %v776 = vpop.f32.mrb[0].mxu0
      %v777 = vadd.f32 0.0, %v776
      %v778 = vpop.f32.mrb[0].mxu0
      %v779 = vadd.f32 0.0, %v778
      %780 = vmatprep.mubr.bf16.mxu0 0
      %781 = vmatmul.mubr.bf16.gmra.mrb[0].mxu0 %v688
      %v782 = vpop.f32.mrb[0].mxu0
      %v783 = vadd.f32 0.0, %v782
      %v784 = vpop.f32.mrb[0].mxu0
      %v785 = vadd.f32 0.0, %v784
      %v786 = vpop.f32.mrb[0].mxu0
      %v787 = vadd.f32 0.0, %v786
      %v788 = vpop.f32.mrb[0].mxu0
      %v789 = vadd.f32 0.0, %v788
      %790 = vmatprep.mubr.bf16.mxu0 0
      %791 = vmatmul.mubr.bf16.gmra.mrb[0].mxu0 %v691
      %v792 = vpop.f32.mrb[0].mxu0
      %v793 = vadd.f32 0.0, %v792
      %v794 = vpop.f32.mrb[0].mxu0
      %v795 = vadd.f32 0.0, %v794
      %v796 = vpop.f32.mrb[0].mxu0
      %v797 = vadd.f32 0.0, %v796
      %v798 = vpop.f32.mrb[0].mxu0
      %v799 = vadd.f32 0.0, %v798
      %800 = vmatprep.mubr.bf16.mxu0 0
      %801 = vmatmul.mubr.bf16.gmra.mrb[0].mxu0 %v694
      %v802 = vpop.f32.mrb[0].mxu0
      %v803 = vadd.f32 0.0, %v802
      %v804 = vpop.f32.mrb[0].mxu0
      %v805 = vadd.f32 0.0, %v804
      %v806 = vpop.f32.mrb[0].mxu0
      %v807 = vadd.f32 0.0, %v806
      %v808 = vpop.f32.mrb[0].mxu0
      %v809 = vadd.f32 0.0, %v808
      %810 = vmatprep.mubr.bf16.mxu0 0
      %811 = vmatmul.mubr.bf16.gmra.mrb[0].mxu0 %v697
      %v812 = vpop.f32.mrb[0].mxu0
      %v813 = vadd.f32 0.0, %v812
      %v814 = vpop.f32.mrb[0].mxu0
      %v815 = vadd.f32 0.0, %v814
      %v816 = vpop.f32.mrb[0].mxu0
      %v817 = vadd.f32 0.0, %v816
      %v818 = vpop.f32.mrb[0].mxu0
      %v819 = vadd.f32 0.0, %v818
      %820 = vmatprep.mubr.bf16.mxu0 0
      %821 = vmatmul.mubr.bf16.gmra.mrb[0].mxu0 %v700
      %v822 = vpop.f32.mrb[0].mxu0
      %v823 = vadd.f32 0.0, %v822
      %v824 = vpop.f32.mrb[0].mxu0
      %v825 = vadd.f32 0.0, %v824
      %v826 = vpop.f32.mrb[0].mxu0
      %v827 = vadd.f32 0.0, %v826
      %v828 = vpop.f32.mrb[0].mxu0
      %v829 = vadd.f32 0.0, %v828
      %830 = vmatprep.mubr.bf16.mxu0 0
      %831 = vmatmul.mubr.bf16.gmra.mrb[0].mxu0 %v703
      %v832 = vpop.f32.mrb[0].mxu0
      %v833 = vadd.f32 0.0, %v832
      %v834 = vpop.f32.mrb[0].mxu0
      %v835 = vadd.f32 0.0, %v834
      %v836 = vpop.f32.mrb[0].mxu0
      %v837 = vadd.f32 0.0, %v836
      %v838 = vpop.f32.mrb[0].mxu0
      %v839 = vadd.f32 0.0, %v838
      %840 = vmatprep.mubr.bf16.mxu0 0
      %841 = vmatmul.mubr.bf16.gmra.mrb[0].mxu0 %v706
      %v842 = vpop.f32.mrb[0].mxu0
      %v843 = vadd.f32 0.0, %v842
      %v844 = vpop.f32.mrb[0].mxu0
      %v845 = vadd.f32 0.0, %v844
      %v846 = vpop.f32.mrb[0].mxu0
      %v847 = vadd.f32 0.0, %v846
      %v848 = vpop.f32.mrb[0].mxu0
      %v849 = vadd.f32 0.0, %v848
      %850 = vmatprep.mubr.bf16.mxu0 0
      %851 = vmatmul.mubr.bf16.gmra.mrb[0].mxu0 %v709
      %v852 = vpop.f32.mrb[0].mxu0
      %v853 = vadd.f32 0.0, %v852
      %v854 = vpop.f32.mrb[0].mxu0
      %v855 = vadd.f32 0.0, %v854
      %v856 = vpop.f32.mrb[0].mxu0
      %v857 = vadd.f32 0.0, %v856
      %v858 = vpop.f32.mrb[0].mxu0
      %v859 = vadd.f32 0.0, %v858
      %860 = vmatprep.mubr.bf16.mxu0 0
      %861 = vmatmul.mubr.bf16.gmra.mrb[0].mxu0 %v712
      %v862 = vpop.f32.mrb[0].mxu0
      %v863 = vadd.f32 0.0, %v862
      %v864 = vpop.f32.mrb[0].mxu0
      %v865 = vadd.f32 0.0, %v864
      %v866 = vpop.f32.mrb[0].mxu0
      %v867 = vadd.f32 0.0, %v866
      %v868 = vpop.f32.mrb[0].mxu0
      %v869 = vadd.f32 0.0, %v868
      %870 = vmatprep.mubr.bf16.mxu0 0
      %871 = vmatmul.mubr.bf16.gmra.mrb[0].mxu0 %v715
      %v872 = vpop.f32.mrb[0].mxu0
      %v873 = vadd.f32 0.0, %v872
      %v874 = vpop.f32.mrb[0].mxu0
      %v875 = vadd.f32 0.0, %v874
      %v876 = vpop.f32.mrb[0].mxu0
      %v877 = vadd.f32 0.0, %v876
      %v878 = vpop.f32.mrb[0].mxu0
      %v879 = vadd.f32 0.0, %v878
      %880 = vmatprep.mubr.bf16.mxu0 0
      %881 = vmatmul.mubr.bf16.gmra.mrb[0].mxu0 %v718
      %v882 = vpop.f32.mrb[0].mxu0
      %v883 = vadd.f32 0.0, %v882
      %v884 = vpop.f32.mrb[0].mxu0
      %v885 = vadd.f32 0.0, %v884
      %v886 = vpop.f32.mrb[0].mxu0
      %v887 = vadd.f32 0.0, %v886
      %v888 = vpop.f32.mrb[0].mxu0
      %v889 = vadd.f32 0.0, %v888
      %890 = vmatprep.mubr.bf16.mxu0 0
      %891 = vmatmul.mubr.bf16.gmra.mrb[0].mxu0 %v721
      %v892 = vpop.f32.mrb[0].mxu0
      %v893 = vadd.f32 0.0, %v892
      %v894 = vpop.f32.mrb[0].mxu0
      %v895 = vadd.f32 0.0, %v894
      %v896 = vpop.f32.mrb[0].mxu0
      %v897 = vadd.f32 0.0, %v896
      %v898 = vpop.f32.mrb[0].mxu0
      %v899 = vadd.f32 0.0, %v898
      %900 = vmatprep.mubr.bf16.mxu0 0
      %901 = vmatmul.mubr.bf16.gmra.mrb[0].mxu0 %v724
      %v902 = vpop.f32.mrb[0].mxu0
      %v903 = vadd.f32 0.0, %v902
      %v904 = vpop.f32.mrb[0].mxu0
      %v905 = vadd.f32 0.0, %v904
      %v906 = vpop.f32.mrb[0].mxu0
      %v907 = vadd.f32 0.0, %v906
      %v908 = vpop.f32.mrb[0].mxu0
      %v909 = vadd.f32 0.0, %v908
      %910 = vmatprep.mubr.bf16.mxu0 0
      %911 = vmatmul.mubr.bf16.gmra.mrb[0].mxu0 %v727
      %v912 = vpop.f32.mrb[0].mxu0
      %v913 = vadd.f32 0.0, %v912
      %v914 = vpop.f32.mrb[0].mxu0
      %v915 = vadd.f32 0.0, %v914
      %v916 = vpop.f32.mrb[0].mxu0
      %v917 = vadd.f32 0.0, %v916
      %v918 = vpop.f32.mrb[0].mxu0
      %v919 = vadd.f32 0.0, %v918
      %920 = vmatprep.mubr.bf16.mxu0 0
      %921 = vmatmul.mubr.bf16.gmra.mrb[0].mxu0 %v730
      %v922 = vpop.f32.mrb[0].mxu0
      %v923 = vadd.f32 0.0, %v922
      %v924 = vpop.f32.mrb[0].mxu0
      %v925 = vadd.f32 0.0, %v924
      %v926 = vpop.f32.mrb[0].mxu0
      %v927 = vadd.f32 0.0, %v926
      %v928 = vpop.f32.mrb[0].mxu0
      %v929 = vadd.f32 0.0, %v928
      %930 = vdwg.mxu0
      %v931 = vld [vmem:[#allocation2] sm:$0x3]
      %v932 = vmax.f32 %v773, %v783
      %v933 = vmax.f32 %v777, %v787
      %v934 = vmax.f32 %v932, %v793
      %v935 = vmax.f32 %v933, %v797
      %v936 = vmax.f32 %v934, %v803
      %v937 = vmax.f32 %v935, %v807
      %v938 = vmax.f32 %v936, %v813
      %v939 = vmax.f32 %v937, %v817
      %v940 = vmax.f32 %v938, %v823
      %v941 = vmax.f32 %v939, %v827
      %v942 = vmax.f32 %v940, %v833
      %v943 = vmax.f32 %v941, %v837
      %v944 = vmax.f32 %v942, %v843
      %v945 = vmax.f32 %v943, %v847
      %v946 = vmax.f32 %v944, %v853
      %v947 = vmax.f32 %v945, %v857
      %v948 = vmax.f32 %v946, %v863
      %v949 = vmax.f32 %v947, %v867
      %v950 = vmax.f32 %v948, %v873
      %v951 = vmax.f32 %v949, %v877
      %v952 = vmax.f32 %v950, %v883
      %v953 = vmax.f32 %v951, %v887
      %v954 = vmax.f32 %v952, %v893
      %v955 = vmax.f32 %v953, %v897
      %v956 = vmax.f32 %v954, %v903
      %v957 = vmax.f32 %v955, %v907
      %v958 = vmax.f32 %v956, %v913
      %v959 = vmax.f32 %v957, %v917
      %v960 = vmax.f32 %v958, %v923
      %v961 = vmax.f32 %v959, %v927
      %v962 = vmax.f32 %v960, %v961
      %v963 = vrot.slane %v962, 4
      %v964 = vmax.f32 %v962, %v963
      %v965 = vrot.slane %v964, 2
      %v966 = vmax.f32 %v964, %v965
      %v967 = vrot.slane %v966, 1
      %v968 = vmax.f32 %v966, %v967
      %v969 = vmax.f32 %v775, %v785
      %v970 = vmax.f32 %v779, %v789
      %v971 = vmax.f32 %v969, %v795
      %v972 = vmax.f32 %v970, %v799
      %v973 = vmax.f32 %v971, %v805
      %v974 = vmax.f32 %v972, %v809
      %v975 = vmax.f32 %v973, %v815
      %v976 = vmax.f32 %v974, %v819
      %v977 = vmax.f32 %v975, %v825
      %v978 = vmax.f32 %v976, %v829
      %v979 = vmax.f32 %v977, %v835
      %v980 = vmax.f32 %v978, %v839
      %v981 = vmax.f32 %v979, %v845
      %v982 = vmax.f32 %v980, %v849
      %v983 = vmax.f32 %v981, %v855
      %v984 = vmax.f32 %v982, %v859
      %v985 = vmax.f32 %v983, %v865
      %v986 = vmax.f32 %v984, %v869
      %v987 = vmax.f32 %v985, %v875
      %v988 = vmax.f32 %v986, %v879
      %v989 = vmax.f32 %v987, %v885
      %v990 = vmax.f32 %v988, %v889
      %v991 = vmax.f32 %v989, %v895
      %v992 = vmax.f32 %v990, %v899
      %v993 = vmax.f32 %v991, %v905
      %v994 = vmax.f32 %v992, %v909
      %v995 = vmax.f32 %v993, %v915
      %v996 = vmax.f32 %v994, %v919
      %v997 = vmax.f32 %v995, %v925
      %v998 = vmax.f32 %v996, %v929
      %v999 = vmax.f32 %v997, %v998
      %v1000 = vrot.slane %v999, 4
      %v1001 = vmax.f32 %v999, %v1000
      %v1002 = vrot.slane %v1001, 2
      %v1003 = vmax.f32 %v1001, %v1002
      %v1004 = vrot.slane %v1003, 1
      %v1005 = vmax.f32 %v1003, %v1004
      %v1008 = vcombine.low %v968, %v1005
      %v1010 = vunpack.c.l.s4 1966171168
      %v1011 = vunpack.c.0.s8 %v1010
      %v1012 = vlaneseq
      %v1013 = vshrl.u32 %v1012, 7
      %v1014 = vsub.s32 %v1011, %v1013
      %v1015 = vrot.slane %v1008, %v1014
      %v1017 = vunpack.c.l.s4 1966171168
      %v1018 = vunpack.c.0.s8 %v1017
      %v1019 = vlaneseq
      %v1020 = vshrl.u32 %v1019, 7
      %v1021 = vsub.s32 %v1018, %v1020
      %v1022 = vrot.slane %v1015, %v1021
      %v1024 = vmax.f32 %v931, %v1022
      %v1025 = vsub.f32 %v931, %v1024
      %v1026 = vmul.f32 %v1025, 1.442695
      %v1027 = vpow.pop %v1026
      %v1029 = vlaneseq
      %v1030 = vshrl.u32 %v1029, 7
      %v1031 = vsub.s32 0, %v1030
      %v1032 = vrot.slane %v1024, %v1031
      %v1033 = vlaneseq
      %v1034 = vshrl.u32 %v1033, 7
      %v1035 = vsub.s32 1, %v1034
      %v1036 = vrot.slane %v1024, %v1035
      %v1039 = vsub.f32 %v773, %v1032
      %v1040 = vsub.f32 %v775, %v1036
      %v1041 = vsub.f32 %v777, %v1032
      %v1042 = vsub.f32 %v779, %v1036
      %v1043 = vsub.f32 %v783, %v1032
      %v1044 = vsub.f32 %v785, %v1036
      %v1045 = vsub.f32 %v787, %v1032
      %v1046 = vsub.f32 %v789, %v1036
      %v1047 = vsub.f32 %v793, %v1032
      %v1048 = vsub.f32 %v795, %v1036
      %v1049 = vsub.f32 %v797, %v1032
      %v1050 = vsub.f32 %v799, %v1036
      %v1051 = vsub.f32 %v803, %v1032
      %v1052 = vsub.f32 %v805, %v1036
      %v1053 = vsub.f32 %v807, %v1032
      %v1054 = vsub.f32 %v809, %v1036
      %v1055 = vsub.f32 %v813, %v1032
      %v1056 = vsub.f32 %v815, %v1036
      %v1057 = vsub.f32 %v817, %v1032
      %v1058 = vsub.f32 %v819, %v1036
      %v1059 = vsub.f32 %v823, %v1032
      %v1060 = vsub.f32 %v825, %v1036
      %v1061 = vsub.f32 %v827, %v1032
      %v1062 = vsub.f32 %v829, %v1036
      %v1063 = vsub.f32 %v833, %v1032
      %v1064 = vsub.f32 %v835, %v1036
      %v1065 = vsub.f32 %v837, %v1032
      %v1066 = vsub.f32 %v839, %v1036
      %v1067 = vsub.f32 %v843, %v1032
      %v1068 = vsub.f32 %v845, %v1036
      %v1069 = vsub.f32 %v847, %v1032
      %v1070 = vsub.f32 %v849, %v1036
      %v1071 = vsub.f32 %v853, %v1032
      %v1072 = vsub.f32 %v855, %v1036
      %v1073 = vsub.f32 %v857, %v1032
      %v1074 = vsub.f32 %v859, %v1036
      %v1075 = vsub.f32 %v863, %v1032
      %v1076 = vsub.f32 %v865, %v1036
      %v1077 = vsub.f32 %v867, %v1032
      %v1078 = vsub.f32 %v869, %v1036
      %v1079 = vsub.f32 %v873, %v1032
      %v1080 = vsub.f32 %v875, %v1036
      %v1081 = vsub.f32 %v877, %v1032
      %v1082 = vsub.f32 %v879, %v1036
      %v1083 = vsub.f32 %v883, %v1032
      %v1084 = vsub.f32 %v885, %v1036
      %v1085 = vsub.f32 %v887, %v1032
      %v1086 = vsub.f32 %v889, %v1036
      %v1087 = vsub.f32 %v893, %v1032
      %v1088 = vsub.f32 %v895, %v1036
      %v1089 = vsub.f32 %v897, %v1032
      %v1090 = vsub.f32 %v899, %v1036
      %v1091 = vsub.f32 %v903, %v1032
      %v1092 = vsub.f32 %v905, %v1036
      %v1093 = vsub.f32 %v907, %v1032
      %v1094 = vsub.f32 %v909, %v1036
      %v1095 = vsub.f32 %v913, %v1032
      %v1096 = vsub.f32 %v915, %v1036
      %v1097 = vsub.f32 %v917, %v1032
      %v1098 = vsub.f32 %v919, %v1036
      %v1099 = vsub.f32 %v923, %v1032
      %v1100 = vsub.f32 %v925, %v1036
      %v1101 = vsub.f32 %v927, %v1032
      %v1102 = vsub.f32 %v929, %v1036
      %v1103 = vmul.f32 %v1039, 1.442695
      %v1104 = vpow.pop %v1103
      %v1105 = vmul.f32 %v1040, 1.442695
      %v1106 = vpow.pop %v1105
      %v1107 = vmul.f32 %v1041, 1.442695
      %v1108 = vpow.pop %v1107
      %v1109 = vmul.f32 %v1042, 1.442695
      %v1110 = vpow.pop %v1109
      %v1111 = vmul.f32 %v1043, 1.442695
      %v1112 = vpow.pop %v1111
      %v1113 = vmul.f32 %v1044, 1.442695
      %v1114 = vpow.pop %v1113
      %v1115 = vmul.f32 %v1045, 1.442695
      %v1116 = vpow.pop %v1115
      %v1117 = vmul.f32 %v1046, 1.442695
      %v1118 = vpow.pop %v1117
      %v1119 = vmul.f32 %v1047, 1.442695
      %v1120 = vpow.pop %v1119
      %v1121 = vmul.f32 %v1048, 1.442695
      %v1122 = vpow.pop %v1121
      %v1123 = vmul.f32 %v1049, 1.442695
      %v1124 = vpow.pop %v1123
      %v1125 = vmul.f32 %v1050, 1.442695
      %v1126 = vpow.pop %v1125
      %v1127 = vmul.f32 %v1051, 1.442695
      %v1128 = vpow.pop %v1127
      %v1129 = vmul.f32 %v1052, 1.442695
      %v1130 = vpow.pop %v1129
      %v1131 = vmul.f32 %v1053, 1.442695
      %v1132 = vpow.pop %v1131
      %v1133 = vmul.f32 %v1054, 1.442695
      %v1134 = vpow.pop %v1133
      %v1135 = vmul.f32 %v1055, 1.442695
      %v1136 = vpow.pop %v1135
      %v1137 = vmul.f32 %v1056, 1.442695
      %v1138 = vpow.pop %v1137
      %v1139 = vmul.f32 %v1057, 1.442695
      %v1140 = vpow.pop %v1139
      %v1141 = vmul.f32 %v1058, 1.442695
      %v1142 = vpow.pop %v1141
      %v1143 = vmul.f32 %v1059, 1.442695
      %v1144 = vpow.pop %v1143
      %v1145 = vmul.f32 %v1060, 1.442695
      %v1146 = vpow.pop %v1145
      %v1147 = vmul.f32 %v1061, 1.442695
      %v1148 = vpow.pop %v1147
      %v1149 = vmul.f32 %v1062, 1.442695
      %v1150 = vpow.pop %v1149
      %v1151 = vmul.f32 %v1063, 1.442695
      %v1152 = vpow.pop %v1151
      %v1153 = vmul.f32 %v1064, 1.442695
      %v1154 = vpow.pop %v1153
      %v1155 = vmul.f32 %v1065, 1.442695
      %v1156 = vpow.pop %v1155
      %v1157 = vmul.f32 %v1066, 1.442695
      %v1158 = vpow.pop %v1157
      %v1159 = vmul.f32 %v1067, 1.442695
      %v1160 = vpow.pop %v1159
      %v1161 = vmul.f32 %v1068, 1.442695
      %v1162 = vpow.pop %v1161
      %v1163 = vmul.f32 %v1069, 1.442695
      %v1164 = vpow.pop %v1163
      %v1165 = vmul.f32 %v1070, 1.442695
      %v1166 = vpow.pop %v1165
      %v1167 = vmul.f32 %v1071, 1.442695
      %v1168 = vpow.pop %v1167
      %v1169 = vmul.f32 %v1072, 1.442695
      %v1170 = vpow.pop %v1169
      %v1171 = vmul.f32 %v1073, 1.442695
      %v1172 = vpow.pop %v1171
      %v1173 = vmul.f32 %v1074, 1.442695
      %v1174 = vpow.pop %v1173
      %v1175 = vmul.f32 %v1075, 1.442695
      %v1176 = vpow.pop %v1175
      %v1177 = vmul.f32 %v1076, 1.442695
      %v1178 = vpow.pop %v1177
      %v1179 = vmul.f32 %v1077, 1.442695
      %v1180 = vpow.pop %v1179
      %v1181 = vmul.f32 %v1078, 1.442695
      %v1182 = vpow.pop %v1181
      %v1183 = vmul.f32 %v1079, 1.442695
      %v1184 = vpow.pop %v1183
      %v1185 = vmul.f32 %v1080, 1.442695
      %v1186 = vpow.pop %v1185
      %v1187 = vmul.f32 %v1081, 1.442695
      %v1188 = vpow.pop %v1187
      %v1189 = vmul.f32 %v1082, 1.442695
      %v1190 = vpow.pop %v1189
      %v1191 = vmul.f32 %v1083, 1.442695
      %v1192 = vpow.pop %v1191
      %v1193 = vmul.f32 %v1084, 1.442695
      %v1194 = vpow.pop %v1193
      %v1195 = vmul.f32 %v1085, 1.442695
      %v1196 = vpow.pop %v1195
      %v1197 = vmul.f32 %v1086, 1.442695
      %v1198 = vpow.pop %v1197
      %v1199 = vmul.f32 %v1087, 1.442695
      %v1200 = vpow.pop %v1199
      %v1201 = vmul.f32 %v1088, 1.442695
      %v1202 = vpow.pop %v1201
      %v1203 = vmul.f32 %v1089, 1.442695
      %v1204 = vpow.pop %v1203
      %v1205 = vmul.f32 %v1090, 1.442695
      %v1206 = vpow.pop %v1205
      %v1207 = vmul.f32 %v1091, 1.442695
      %v1208 = vpow.pop %v1207
      %v1209 = vmul.f32 %v1092, 1.442695
      %v1210 = vpow.pop %v1209
      %v1211 = vmul.f32 %v1093, 1.442695
      %v1212 = vpow.pop %v1211
      %v1213 = vmul.f32 %v1094, 1.442695
      %v1214 = vpow.pop %v1213
      %v1215 = vmul.f32 %v1095, 1.442695
      %v1216 = vpow.pop %v1215
      %v1217 = vmul.f32 %v1096, 1.442695
      %v1218 = vpow.pop %v1217
      %v1219 = vmul.f32 %v1097, 1.442695
      %v1220 = vpow.pop %v1219
      %v1221 = vmul.f32 %v1098, 1.442695
      %v1222 = vpow.pop %v1221
      %v1223 = vmul.f32 %v1099, 1.442695
      %v1224 = vpow.pop %v1223
      %v1225 = vmul.f32 %v1100, 1.442695
      %v1226 = vpow.pop %v1225
      %v1227 = vmul.f32 %v1101, 1.442695
      %v1228 = vpow.pop %v1227
      %v1229 = vmul.f32 %v1102, 1.442695
      %v1230 = vpow.pop %v1229
      %v1231 = vpack.c.bf16 %v1108, %v1104
      %v1232 = vpack.c.bf16 %v1110, %v1106
      %v1233 = vpack.c.bf16 %v1116, %v1112
      %v1234 = vpack.c.bf16 %v1118, %v1114
      %v1235 = vpack.c.bf16 %v1124, %v1120
      %v1236 = vpack.c.bf16 %v1126, %v1122
      %v1237 = vpack.c.bf16 %v1132, %v1128
      %v1238 = vpack.c.bf16 %v1134, %v1130
      %v1239 = vpack.c.bf16 %v1140, %v1136
      %v1240 = vpack.c.bf16 %v1142, %v1138
      %v1241 = vpack.c.bf16 %v1148, %v1144
      %v1242 = vpack.c.bf16 %v1150, %v1146
      %v1243 = vpack.c.bf16 %v1156, %v1152
      %v1244 = vpack.c.bf16 %v1158, %v1154
      %v1245 = vpack.c.bf16 %v1164, %v1160
      %v1246 = vpack.c.bf16 %v1166, %v1162
      %v1247 = vpack.c.bf16 %v1172, %v1168
      %v1248 = vpack.c.bf16 %v1174, %v1170
      %v1249 = vpack.c.bf16 %v1180, %v1176
      %v1250 = vpack.c.bf16 %v1182, %v1178
      %v1251 = vpack.c.bf16 %v1188, %v1184
      %v1252 = vpack.c.bf16 %v1190, %v1186
      %v1253 = vpack.c.bf16 %v1196, %v1192
      %v1254 = vpack.c.bf16 %v1198, %v1194
      %v1255 = vpack.c.bf16 %v1204, %v1200
      %v1256 = vpack.c.bf16 %v1206, %v1202
      %v1257 = vpack.c.bf16 %v1212, %v1208
      %v1258 = vpack.c.bf16 %v1214, %v1210
      %v1259 = vpack.c.bf16 %v1220, %v1216
      %v1260 = vpack.c.bf16 %v1222, %v1218
      %v1261 = vpack.c.bf16 %v1228, %v1224
      %v1262 = vpack.c.bf16 %v1230, %v1226
      %v1263 = vsel %vm458, 1.0, 0.0
      %v1264 = vpack.c.bf16 %v587, %v581
      %v1265 = vpack.c.bf16 %v589, %v583
      %v1266 = vpack.c.bf16 %v597, %v591
      %v1267 = vpack.c.bf16 %v599, %v593
      %v1268 = vpack.c.bf16 %v1263, %v1263
      %1269 = vmatprep.subr.bf16.mxu0 %v1232
      %1270 = vmatpush1.bf16.msra.mxu0 %v1231
      %1271 = vmatprep.subr.bf16.mxu0 %v1234
      %1272 = vmatpush1.bf16.msra.mxu0 %v1233
      %1273 = vmatprep.subr.bf16.mxu0 %v1236
      %1274 = vmatpush1.bf16.msra.mxu0 %v1235
      %1275 = vmatprep.subr.bf16.mxu0 %v1238
      %1276 = vmatpush1.bf16.msra.mxu0 %v1237
      %1277 = vmatprep.subr.bf16.mxu0 %v1240
      %1278 = vmatpush1.bf16.msra.mxu0 %v1239
      %1279 = vmatprep.subr.bf16.mxu0 %v1242
      %1280 = vmatpush1.bf16.msra.mxu0 %v1241
      %1281 = vmatprep.subr.bf16.mxu0 %v1244
      %1282 = vmatpush1.bf16.msra.mxu0 %v1243
      %1283 = vmatprep.subr.bf16.mxu0 %v1246
      %1284 = vmatpush1.bf16.msra.mxu0 %v1245
      %1285 = vmatprep.subr.bf16.mxu0 %v1248
      %1286 = vmatpush1.bf16.msra.mxu0 %v1247
      %1287 = vmatprep.subr.bf16.mxu0 %v1250
      %1288 = vmatpush1.bf16.msra.mxu0 %v1249
      %1289 = vmatprep.subr.bf16.mxu0 %v1252
      %1290 = vmatpush1.bf16.msra.mxu0 %v1251
      %1291 = vmatprep.subr.bf16.mxu0 %v1254
      %1292 = vmatpush1.bf16.msra.mxu0 %v1253
      %1293 = vmatprep.subr.bf16.mxu0 %v1256
      %1294 = vmatpush1.bf16.msra.mxu0 %v1255
      %1295 = vmatprep.subr.bf16.mxu0 %v1258
      %1296 = vmatpush1.bf16.msra.mxu0 %v1257
      %1297 = vmatprep.subr.bf16.mxu0 %v1260
      %1298 = vmatpush1.bf16.msra.mxu0 %v1259
      %1299 = vmatprep.subr.bf16.mxu0 %v1262
      %1300 = vmatpush1.bf16.msra.mxu0 %v1261
      %1301 = vmatprep.mubr.bf16.mxu0 %v1265
      %1302 = vmatmul.mubr.bf16.gmra.mrb[0].mxu0 %v1264
      %v1303 = vpop.f32.mrb[0].mxu0
      %v1304 = vadd.f32 0.0, %v1303
      %v1305 = vpop.f32.mrb[0].mxu0
      %v1306 = vadd.f32 0.0, %v1305
      %v1307 = vpop.f32.mrb[0].mxu0
      %v1308 = vadd.f32 0.0, %v1307
      %v1309 = vpop.f32.mrb[0].mxu0
      %v1310 = vadd.f32 0.0, %v1309
      %1311 = vmatprep.mubr.bf16.mxu0 %v1267
      %1312 = vmatmul.mubr.bf16.gmra.mrb[0].mxu0 %v1266
      %v1313 = vpop.f32.mrb[0].mxu0
      %v1314 = vadd.f32 0.0, %v1313
      %v1315 = vpop.f32.mrb[0].mxu0
      %v1316 = vadd.f32 0.0, %v1315
      %v1317 = vpop.f32.mrb[0].mxu0
      %v1318 = vadd.f32 0.0, %v1317
      %v1319 = vpop.f32.mrb[0].mxu0
      %v1320 = vadd.f32 0.0, %v1319
      %1321 = vmatprep.mubr.bf16.mxu0 %v1268
      %1322 = vmatmul.mubr.bf16.gmra.mrb[0].mxu0 %v1268
      %v1323 = vpop.f32.mrb[0].mxu0
      %v1324 = vadd.f32 0.0, %v1323
      %v1325 = vpop.f32.mrb[0].mxu0
      %v1326 = vadd.f32 0.0, %v1325
      %v1327 = vpop.f32.mrb[0].mxu0
      %v1328 = vpop.f32.mrb[0].mxu0
      %1329 = vdwg.mxu0
      %v1330 = vld [vmem:[#allocation3] sm:$0xff]
      %v1331 = vld [vmem:[#allocation3 + $0x8] sm:$0xff]
      %v1332 = vld [vmem:[#allocation3 + $0x10] sm:$0xff]
      %v1333 = vld [vmem:[#allocation3 + $0x18] sm:$0xff]
      %v1334 = vld [vmem:[#allocation3 + $0x20] sm:$0xff]
      %v1335 = vld [vmem:[#allocation3 + $0x28] sm:$0xff]
      %v1336 = vld [vmem:[#allocation3 + $0x30] sm:$0xff]
      %v1337 = vld [vmem:[#allocation3 + $0x38] sm:$0xff]
      %v1338 = vld [vmem:[#allocation3 + $0x40] sm:$0xff]
      %v1339 = vld [vmem:[#allocation3 + $0x48] sm:$0xff]
      %v1341 = vlaneseq
      %v1342 = vshrl.u32 %v1341, 7
      %v1343 = vsub.s32 0, %v1342
      %v1344 = vrot.slane %v1027, %v1343
      %v1345 = vlaneseq
      %v1346 = vshrl.u32 %v1345, 7
      %v1347 = vsub.s32 1, %v1346
      %v1348 = vrot.slane %v1027, %v1347
      %v1351 = vmul.f32 %v1344, %v1330
      %v1352 = vmul.f32 %v1348, %v1331
      %v1353 = vmul.f32 %v1344, %v1332
      %v1354 = vmul.f32 %v1348, %v1333
      %v1355 = vmul.f32 %v1344, %v1334
      %v1356 = vmul.f32 %v1348, %v1335
      %v1357 = vmul.f32 %v1344, %v1336
      %v1358 = vmul.f32 %v1348, %v1337
      %v1359 = vmul.f32 %v1344, %v1338
      %v1360 = vmul.f32 %v1348, %v1339
      %v1361 = vadd.f32 %v1351, %v1304
      %v1362 = vadd.f32 %v1352, %v1306
      %v1363 = vadd.f32 %v1353, %v1308
      %v1364 = vadd.f32 %v1354, %v1310
      %v1365 = vadd.f32 %v1355, %v1314
      %v1366 = vadd.f32 %v1356, %v1316
      %v1367 = vadd.f32 %v1357, %v1318
      %v1368 = vadd.f32 %v1358, %v1320
      %v1369 = vadd.f32 %v1359, %v1324
      %v1370 = vadd.f32 %v1360, %v1326
      %1371 = vst [vmem:[#allocation3] sm:$0xff] %v1361
      %1372 = vst [vmem:[#allocation3 + $0x8] sm:$0xff] %v1362
      %1373 = vst [vmem:[#allocation3 + $0x10] sm:$0xff] %v1363
      %1374 = vst [vmem:[#allocation3 + $0x18] sm:$0xff] %v1364
      %1375 = vst [vmem:[#allocation3 + $0x20] sm:$0xff] %v1365
      %1376 = vst [vmem:[#allocation3 + $0x28] sm:$0xff] %v1366
      %1377 = vst [vmem:[#allocation3 + $0x30] sm:$0xff] %v1367
      %1378 = vst [vmem:[#allocation3 + $0x38] sm:$0xff] %v1368
      %1379 = vst [vmem:[#allocation3 + $0x40] sm:$0xff] %v1369
      %1380 = vst [vmem:[#allocation3 + $0x48] sm:$0xff] %v1370
      %v1381 = vlaneseq
      %vm1382 = vcmp.ge.s32.totalorder %v1381, 0
      %vm1383 = vcmp.lt.s32.totalorder %v1381, 256
      %vm1384 = vmand %vm1382, %vm1383
      %1385 = vst.msk [vmem:[#allocation2] sm:$0x3] %vm1384, %v1024
      // Predicated region
      $region49: #{spatial_deps_local_guide.1} parent=43 // pred_check
        %p1386 = pneg %p402
      $region50: #{spatial_deps_local_guide.1} parent=43 // pred_check_branch
        %1388 = sbr.rel (%p1386) target = $region52
      $region51: #{spatial_deps_local_guide.1} parent=43 // pred_region
        %v1389 = vld [vmem:[#allocation3] sm:$0xff]
        %v1390 = vld [vmem:[#allocation3 + $0x8] sm:$0xff]
        %v1391 = vld [vmem:[#allocation3 + $0x10] sm:$0xff]
        %v1392 = vld [vmem:[#allocation3 + $0x18] sm:$0xff]
        %v1393 = vld [vmem:[#allocation3 + $0x20] sm:$0xff]
        %v1394 = vld [vmem:[#allocation3 + $0x28] sm:$0xff]
        %v1395 = vld [vmem:[#allocation3 + $0x30] sm:$0xff]
        %v1396 = vld [vmem:[#allocation3 + $0x38] sm:$0xff]
        %v1397 = vld [vmem:[#allocation3 + $0x40] sm:$0xff]
        %v1398 = vld [vmem:[#allocation3 + $0x48] sm:$0xff]
        %v1399 = vrcp.pop %v1397
        %v1400 = vrcp.pop %v1398
        %s1401 = sld [smem:[#allocation4]]
        %v1402 = vlaneseq
        %v1403 = vshrl.u32 %v1402, 7
        %v1404 = vsub.s32 0, %v1403
        %v1405 = vrot.slane %v1399, %v1404
        %v1406 = vlaneseq
        %v1407 = vshrl.u32 %v1406, 7
        %v1408 = vsub.s32 0, %v1407
        %v1409 = vrot.slane %v1400, %v1408
        %v1410 = vmul.f32 %v1389, %v1405
        %v1411 = vmul.f32 %v1390, %v1409
        %v1412 = vmul.f32 %v1391, %v1405
        %v1413 = vmul.f32 %v1392, %v1409
        %v1414 = vmul.f32 %v1393, %v1405
        %v1415 = vmul.f32 %v1394, %v1409
        %v1416 = vmul.f32 %v1395, %v1405
        %v1417 = vmul.f32 %v1396, %v1409
        %v1418 = vstv %s1401
        %v1419 = vmul.f32 %v1418, %v1410
        %v1420 = vmul.f32 %v1418, %v1411
        %v1421 = vmul.f32 %v1418, %v1412
        %v1422 = vmul.f32 %v1418, %v1413
        %v1423 = vmul.f32 %v1418, %v1414
        %v1424 = vmul.f32 %v1418, %v1415
        %v1425 = vmul.f32 %v1418, %v1416
        %v1426 = vmul.f32 %v1418, %v1417
        %v1427 = vld [vmem:[%s361] sm:$0xff]
        %v1428 = vld [vmem:[%s361 + $0x8] sm:$0xff]
        %v1429 = vld [vmem:[%s361 + $0x10] sm:$0xff]
        %v1430 = vld [vmem:[%s361 + $0x18] sm:$0xff]
        %v1431 = vld [vmem:[%s361 + $0x20] sm:$0xff]
        %v1432 = vld [vmem:[%s361 + $0x28] sm:$0xff]
        %v1433 = vld [vmem:[%s361 + $0x30] sm:$0xff]
        %v1434 = vld [vmem:[%s361 + $0x38] sm:$0xff]
        %v1435 = vadd.f32 %v1419, %v1427
        %v1436 = vadd.f32 %v1420, %v1428
        %v1437 = vadd.f32 %v1421, %v1429
        %v1438 = vadd.f32 %v1422, %v1430
        %v1439 = vadd.f32 %v1423, %v1431
        %v1440 = vadd.f32 %v1424, %v1432
        %v1441 = vadd.f32 %v1425, %v1433
        %v1442 = vadd.f32 %v1426, %v1434
        %1443 = vst [vmem:[%s399] sm:$0xff] %v1435
        %1444 = vst [vmem:[%s399 + $0x8] sm:$0xff] %v1436
        %1445 = vst [vmem:[%s399 + $0x10] sm:$0xff] %v1437
        %1446 = vst [vmem:[%s399 + $0x18] sm:$0xff] %v1438
        %1447 = vst [vmem:[%s399 + $0x20] sm:$0xff] %v1439
        %1448 = vst [vmem:[%s399 + $0x28] sm:$0xff] %v1440
        %1449 = vst [vmem:[%s399 + $0x30] sm:$0xff] %v1441
        %1450 = vst [vmem:[%s399 + $0x38] sm:$0xff] %v1442
      $region52: #{spatial_deps_local_guide.1} parent=43 // pred_fallthru
        _
      %s1451 = smul.u32 2, %s24
      %p1452 = scmp.lt.s32.totalorder %s23, 1
      %s1453 = scalar_select %p1452, %s23, 1
      %p1454 = scmp.lt.s32.totalorder %s1451, 1
      %s1455 = scalar_select %p1454, %s1451, 1
      %s1456 = smul.addr %s1453, 8
      %s1457 = sadd.s32 %s1455, %s1456
      %s1458 = smul.addr %s1457, 8
      %s1459 = scalar_lea.vmem %s6, %s1458
      // Predicated region
      $region53: #{spatial_deps_local_guide.1} parent=43 // pred_check
        %p1460 = pneg %p211
      $region54: #{spatial_deps_local_guide.1} parent=43 // pred_check_branch
        %1462 = sbr.rel (%p1460) target = $region56
      $region55: #{spatial_deps_local_guide.1} parent=43 // pred_region
        %s1463 = smul.u32 2, %s24
      $region56: #{spatial_deps_local_guide.1} parent=43 // pred_fallthru
        _
    $region44: #{spatial_deps_local_guide.1} parent=5 // pred_fallthru
      _
    %p1464 = scmp.le.s32.totalorder 2, %s13
    // Predicated region
    $region57: #{spatial_deps_local_guide.1} parent=5 // pred_check
      %p1465 = pneg %p1464
    $region58: #{spatial_deps_local_guide.1} parent=5 // pred_check_branch
      %1467 = sbr.rel (%p1465) target = $region60
    $region59: #{spatial_deps_local_guide.1} parent=5 // pred_region
      %s1468 = ssub.s32 %s13, 2
      // Predicated region
      $region61: #{spatial_deps_local_guide.1} parent=59 // pred_check
        %p1469 = pneg %p217
      $region62: #{spatial_deps_local_guide.1} parent=59 // pred_check_branch
        %1471 = sbr.rel (%p1469) target = $region64
      $region63: #{spatial_deps_local_guide.1} parent=59 // pred_region
        %s1472 = smul.u32 2, %s27
        %p1473 = scmp.lt.s32.totalorder %s26, 1
        %s1474 = scalar_select %p1473, %s26, 1
        %p1475 = scmp.lt.s32.totalorder %s1472, 1
        %s1476 = scalar_select %p1475, %s1472, 1
        %s1477 = smul.addr %s1474, 8
        %s1478 = sadd.s32 %s1476, %s1477
        %s1479 = smul.addr %s1478, 8
        %s1480 = scalar_lea.vmem %s6, %s1479
      $region64: #{spatial_deps_local_guide.1} parent=59 // pred_fallthru
        _
    $region60: #{spatial_deps_local_guide.1} parent=5 // pred_fallthru
      _
  $region6: #{spatial_deps_local_guide.1} parent=0 // loop_footer
    %s17 = sadd.s32 1, %s13
  $region7: #{spatial_deps_local_guide.1} parent=0 // loop_footer_branch
    %12 = sbr.rel target = $region3
  $region8: #{spatial_deps_local_guide.1} parent=0 // loop_exit
    _

</llo_original>
